<compile_context>
chip_gen: v5e
topology: v5e:2x2
jax: 0.10.0
libtpu: 0.0.40
codegen_flags: <defaults>
</compile_context>

<pallas_src>
import functools

import jax
import jax.numpy as jnp
import numpy as np
from jax.experimental import pallas as pl
from jax.experimental.pallas import tpu as pltpu

NEG_SLOPE = 0.01                 # nn.LeakyReLU default negative_slope
BN_EPS = 1e-5                    # nn.BatchNorm2d default eps
POOL_K = 9                       # module's pool_kernel_size
POOL_PAD = (POOL_K - 1) // 2     # module's pool_padding = 4
TILE_M_MAX = 1024                # lane tile of flattened output positions
VMEM_LIMIT = 32 * 1024 * 1024    # fits v7x's 64 MiB physical VMEM with headroom


def _round_up(x, m):
    return (x + m - 1) // m * m


# --------------------------------------------------------------------------------------
# Kernel 1: conv (single K = KH*KW*Cin contraction) + bias + LeakyReLU + BN partial sums
# --------------------------------------------------------------------------------------
def _conv_lrelu_stats_kernel(xa_ref, xb_ref, w_ref, b_ref, mask_ref,
                             y_ref, psum_ref, psumsq_ref, patch_ref,
                             *, offs, cin, tile_m):
    # Assemble the (KK*Cin, tile_m) patch matrix in VMEM from the aligned tile (xa) and
    # its halo tile (xb).  Tap offsets are compile-time constants -> all slices static.
    for t, off in enumerate(offs):
        r0 = t * cin
        if off == 0:
            patch_ref[r0:r0 + cin, :] = xa_ref[0]
        else:
            patch_ref[r0:r0 + cin, :tile_m - off] = xa_ref[0, :, off:]
            patch_ref[r0:r0 + cin, tile_m - off:] = xb_ref[0, :, :off]

    # One MXU contraction, transposed so the big M tile is lane-dense on the output.
    y = jnp.dot(w_ref[...], patch_ref[...], preferred_element_type=jnp.float32)
    y = y + b_ref[...]                              # conv bias
    y = jnp.where(y >= 0, y, NEG_SLOPE * y)         # LeakyReLU
    y_ref[0] = y.astype(y_ref.dtype)

    # Per-tile, per-channel partial sums for the (global) BatchNorm batch statistics.
    yv = y * mask_ref[...]                          # zero out pad / junk columns
    psum_ref[0, 0] = jnp.sum(yv, axis=1, keepdims=True)
    psumsq_ref[0, 0] = jnp.sum(yv * yv, axis=1, keepdims=True)


# --------------------------------------------------------------------------------------
# Kernel 2: BatchNorm affine + separable 9x9 stride-1 max pool (implicit -inf padding)
# --------------------------------------------------------------------------------------
def _bn_pool_kernel(y_ref, scale_ref, shift_ref, mask_ref, o_ref, *, w_row):
    neg = jnp.float32(-jnp.inf)
    l = o_ref.shape[2]
    col = jax.lax.broadcasted_iota(jnp.int32, (1, l), 1)

    z = y_ref[0] * scale_ref[...] + shift_ref[...]          # BatchNorm affine
    z = jnp.where(mask_ref[...] > 0, z, neg)                # pad / junk positions -> -inf

    def shifted(a, s):
        # result[:, i] = a[:, i + s]; out-of-array positions filled with -inf.
        rolled = pltpu.roll(a, (-s) % l, axis=1)
        ok = (col + s >= 0) & (col + s < l)
        return jnp.where(ok, rolled, neg)

    # Separable pool: 1x9 max along W ...
    r = z
    for dw in range(1, POOL_PAD + 1):
        r = jnp.maximum(r, shifted(z, dw))
        r = jnp.maximum(r, shifted(z, -dw))
    # ... then 9x1 max along H (one image row is a flat shift by w_row).
    out = r
    for dh in range(1, POOL_PAD + 1):
        out = jnp.maximum(out, shifted(r, dh * w_row))
        out = jnp.maximum(out, shifted(r, -dh * w_row))
    o_ref[0] = out.astype(o_ref.dtype)


# --------------------------------------------------------------------------------------
# Wrapper
# --------------------------------------------------------------------------------------
def cnn2d_block(x_nchw, conv_w, conv_b, bn_gamma, bn_beta):
    """CNN2DBlock forward (module in training mode). x: (N, Cin, H, W) -> (N, Cout, H, W)."""
    N, Cin, H, W = x_nchw.shape
    Cout, _, KH, KW = conv_w.shape

    # PyTorch padding='same' (stride=1, dilation=1): left/top = (k-1)//2, right/bottom = rest.
    ph0 = (KH - 1) // 2
    ph1 = (KH - 1) - ph0
    pw0 = (KW - 1) // 2
    pw1 = (KW - 1) - pw0

    # Common flat row stride: wide enough for both the conv taps and the pool's +/-4 reach,
    # so the junk gap between consecutive rows absorbs every shift used by the kernels.
    w_row = W + max(KW - 1, POOL_PAD)
    h_pad = H + KH - 1
    max_off = (KH - 1) * w_row + (KW - 1)           # largest conv-tap shift
    l_out = H * w_row                               # flat output span (incl. junk columns)

    tile_m = min(TILE_M_MAX, _round_up(l_out, 128))
    tile_m = max(tile_m, _round_up(max_off + 1, 128))   # one halo tile covers all taps
    num_tiles = pl.cdiv(l_out, tile_m)
    l_out_pad = num_tiles * tile_m
    l_in_pad = (num_tiles + 1) * tile_m             # +1 tile of halo for the last M tile

    f32 = jnp.float32

    # Flattened zero-padded input with row stride w_row.  NCHW already has (N, C) leading,
    # so no transpose is needed anywhere in the block.
    xp = jnp.pad(x_nchw.astype(f32),
                 ((0, 0), (0, 0), (ph0, ph1), (pw0, pw1 + (w_row - (W + KW - 1)))))
    xf = xp.reshape(N, Cin, h_pad * w_row)
    xf = jnp.pad(xf, ((0, 0), (0, 0), (0, l_in_pad - h_pad * w_row)))

    # Weights as one (Cout, KH*KW*Cin) matrix matching the patch row order (tap, cin).
    kk_cin = KH * KW * Cin
    wmat = jnp.transpose(conv_w, (0, 2, 3, 1)).reshape(Cout, kk_cin).astype(f32)
    bvec = conv_b.reshape(Cout, 1).astype(f32)

    # Validity mask over flat output positions (kills pad rows / junk columns).
    cols = jnp.arange(l_out_pad, dtype=jnp.int32)
    mask = (((cols % w_row) < W) & (cols < l_out)).astype(f32).reshape(1, l_out_pad)

    offs = tuple(dy * w_row + dx for dy in range(KH) for dx in range(KW))

    conv_kernel = functools.partial(_conv_lrelu_stats_kernel,
                                    offs=offs, cin=Cin, tile_m=tile_m)
    y, psum, psumsq = pl.pallas_call(
        conv_kernel,
        grid=(N, num_tiles),
        in_specs=[
            pl.BlockSpec((1, Cin, tile_m), lambda n, j: (n, 0, j)),        # aligned tile
            pl.BlockSpec((1, Cin, tile_m), lambda n, j: (n, 0, j + 1)),    # halo tile
            pl.BlockSpec((Cout, kk_cin), lambda n, j: (0, 0)),
            pl.BlockSpec((Cout, 1), lambda n, j: (0, 0)),
            pl.BlockSpec((1, tile_m), lambda n, j: (0, j)),
        ],
        out_specs=(
            pl.BlockSpec((1, Cout, tile_m), lambda n, j: (n, 0, j)),
            pl.BlockSpec((1, 1, Cout, 1), lambda n, j: (n, j, 0, 0)),
            pl.BlockSpec((1, 1, Cout, 1), lambda n, j: (n, j, 0, 0)),
        ),
        out_shape=(
            jax.ShapeDtypeStruct((N, Cout, l_out_pad), f32),
            jax.ShapeDtypeStruct((N, num_tiles, Cout, 1), f32),
            jax.ShapeDtypeStruct((N, num_tiles, Cout, 1), f32),
        ),
        scratch_shapes=[pltpu.VMEM((kk_cin, tile_m), f32)],
        compiler_params=pltpu.CompilerParams(
            dimension_semantics=("parallel", "parallel"),
            vmem_limit_bytes=VMEM_LIMIT),
    )(xf, xf, wmat, bvec, mask)

    # Finalize global BatchNorm training statistics (tiny per-channel math).
    count = jnp.float32(N * H * W)
    s1 = jnp.sum(psum, axis=(0, 1))[:, 0]
    s2 = jnp.sum(psumsq, axis=(0, 1))[:, 0]
    mean = s1 / count
    var = s2 / count - mean * mean                  # biased variance (training-mode BN)
    inv = jax.lax.rsqrt(var + BN_EPS)
    g = bn_gamma.astype(f32)
    scale = (g * inv).reshape(Cout, 1)
    shift = (bn_beta.astype(f32) - mean * g * inv).reshape(Cout, 1)

    pool_kernel = functools.partial(_bn_pool_kernel, w_row=w_row)
    pooled = pl.pallas_call(
        pool_kernel,
        grid=(N,),
        in_specs=[
            pl.BlockSpec((1, Cout, l_out_pad), lambda n: (n, 0, 0)),
            pl.BlockSpec((Cout, 1), lambda n: (0, 0)),
            pl.BlockSpec((Cout, 1), lambda n: (0, 0)),
            pl.BlockSpec((1, l_out_pad), lambda n: (0, 0)),
        ],
        out_specs=pl.BlockSpec((1, Cout, l_out_pad), lambda n: (n, 0, 0)),
        out_shape=jax.ShapeDtypeStruct((N, Cout, l_out_pad), f32),
        compiler_params=pltpu.CompilerParams(
            dimension_semantics=("parallel",),
            vmem_limit_bytes=VMEM_LIMIT),
    )(y, scale, shift, mask)

    # Already NCHW-ordered; just drop the pad columns.
    return pooled[:, :, :l_out].reshape(N, Cout, H, w_row)[:, :, :, :W]


# --------------------------------------------------------------------------------------
# Pure-JAX reference mirroring the PyTorch forward (module in training mode)
# --------------------------------------------------------------------------------------
def _reference(x, conv_w, conv_b, gamma, beta):
    _, _, KH, KW = conv_w.shape
    ph0 = (KH - 1) // 2
    ph1 = (KH - 1) - ph0
    pw0 = (KW - 1) // 2
    pw1 = (KW - 1) - pw0
    y = jax.lax.conv_general_dilated(
        x, conv_w, window_strides=(1, 1),
        padding=((ph0, ph1), (pw0, pw1)),
        dimension_numbers=("NCHW", "OIHW", "NCHW"))
    y = y + conv_b.reshape(1, -1, 1, 1)
    y = jnp.where(y >= 0, y, NEG_SLOPE * y)
    mean = jnp.mean(y, axis=(0, 2, 3), keepdims=True)
    var = jnp.mean(jnp.square(y - mean), axis=(0, 2, 3), keepdims=True)
    y = (y - mean) / jnp.sqrt(var + BN_EPS)
    y = y * gamma.reshape(1, -1, 1, 1) + beta.reshape(1, -1, 1, 1)
    y = jax.lax.reduce_window(
        y, -jnp.inf, jax.lax.max,
        window_dimensions=(1, 1, POOL_K, POOL_K),
        window_strides=(1, 1, 1, 1),
        padding=((0, 0), (0, 0), (POOL_PAD, POOL_PAD), (POOL_PAD, POOL_PAD)))
    return y


if __name__ == "__main__":
    key = jax.random.PRNGKey(0)
    fwd = jax.jit(cnn2d_block)

    configs = [
        # (N, Cin, H, W, Cout, KH, KW, default-BN-init?)
        (2, 4, 16, 16, 8, 3, 3, True),     # main small config (module-default gamma/beta)
        (1, 3, 12, 10, 16, 4, 5, False),   # even/odd kernel -> asymmetric 'same' padding
    ]

    for (N, Cin, H, W, Cout, KH, KW, default_bn) in configs:
        key, kx, kw, kb, kg, kbt = jax.random.split(key, 6)
        x = jax.random.normal(kx, (N, Cin, H, W), jnp.float32)

        # Conv2d-style deterministic uniform init; BN defaults gamma=1, beta=0.
        fan_in = Cin * KH * KW
        bound = 1.0 / float(np.sqrt(fan_in))
        conv_w = jax.random.uniform(kw, (Cout, Cin, KH, KW), jnp.float32, -bound, bound)
        conv_b = jax.random.uniform(kb, (Cout,), jnp.float32, -bound, bound)
        if default_bn:
            bn_gamma = jnp.ones((Cout,), jnp.float32)
            bn_beta = jnp.zeros((Cout,), jnp.float32)
        else:
            bn_gamma = jax.random.uniform(kg, (Cout,), jnp.float32, 0.5, 1.5)
            bn_beta = 0.1 * jax.random.normal(kbt, (Cout,), jnp.float32)

        out = jax.block_until_ready(fwd(x, conv_w, conv_b, bn_gamma, bn_beta))
        assert out.shape == (N, Cout, H, W)

        ref = jax.block_until_ready(_reference(x, conv_w, conv_b, bn_gamma, bn_beta))
        np.testing.assert_allclose(np.asarray(out), np.asarray(ref), rtol=2e-4, atol=2e-4)

    print("KERNEL_OK")
</pallas_src>

<mosaic_0001>
module attributes {stable_mosaic.version = 11 : i64} {
  func.func @_bn_pool_kernel(%arg0: i32, %arg1: memref<1x8x384xf32, #tpu.memory_space<vmem>>, %arg2: memref<8x1xf32, #tpu.memory_space<vmem>>, %arg3: memref<8x1xf32, #tpu.memory_space<vmem>>, %arg4: memref<1x384xf32, #tpu.memory_space<vmem>>, %arg5: memref<1x8x384xf32, #tpu.memory_space<vmem>>) attributes {dimension_semantics = [#tpu.dimension_semantics<parallel>], iteration_bounds = array<i64: 2>, scalar_prefetch = 0 : i64, scratch_operands = 0 : i64, tpu.core_type = #tpu.core_type<tc>, window_params = [{transform_indices = @transform_0, window_bounds = array<i64: 1, 8, 384>}, {pipeline_mode = #tpu.pipeline_mode<synchronous>, transform_indices = @transform_1, window_bounds = array<i64: 8, 1>}, {pipeline_mode = #tpu.pipeline_mode<synchronous>, transform_indices = @transform_2, window_bounds = array<i64: 8, 1>}, {pipeline_mode = #tpu.pipeline_mode<synchronous>, transform_indices = @transform_3, window_bounds = array<i64: 1, 384>}, {transform_indices = @transform_4, window_bounds = array<i64: 1, 8, 384>}]} {
    %0 = tpu.iota {dimensions = array<i32: 1>} : vector<1x384xi32>
    %c0 = arith.constant 0 : index
    %c0_0 = arith.constant 0 : index
    %c0_1 = arith.constant 0 : index
    %1 = vector.load %arg1[%c0, %c0_0, %c0_1] : memref<1x8x384xf32, #tpu.memory_space<vmem>>, vector<1x8x384xf32>
    %2 = vector.shape_cast %1 : vector<1x8x384xf32> to vector<8x384xf32>
    %c0_2 = arith.constant 0 : index
    %c0_3 = arith.constant 0 : index
    %3 = vector.load %arg2[%c0_2, %c0_3] : memref<8x1xf32, #tpu.memory_space<vmem>>, vector<8x1xf32>
    %4 = vector.broadcast %3 : vector<8x1xf32> to vector<8x384xf32>
    %5 = arith.mulf %2, %4 : vector<8x384xf32>
    %c0_4 = arith.constant 0 : index
    %c0_5 = arith.constant 0 : index
    %6 = vector.load %arg3[%c0_4, %c0_5] : memref<8x1xf32, #tpu.memory_space<vmem>>, vector<8x1xf32>
    %7 = vector.broadcast %6 : vector<8x1xf32> to vector<8x384xf32>
    %8 = arith.addf %5, %7 : vector<8x384xf32>
    %c0_6 = arith.constant 0 : index
    %c0_7 = arith.constant 0 : index
    %9 = vector.load %arg4[%c0_6, %c0_7] : memref<1x384xf32, #tpu.memory_space<vmem>>, vector<1x384xf32>
    %cst = arith.constant 0.000000e+00 : f32
    %10 = vector.broadcast %cst : f32 to vector<1x384xf32>
    %11 = arith.cmpf ogt, %9, %10 : vector<1x384xf32>
    %cst_8 = arith.constant 0xFF800000 : f32
    %12 = vector.shape_cast %11 : vector<1x384xi1> to vector<1x384xi1>
    %13 = vector.broadcast %12 : vector<1x384xi1> to vector<8x384xi1>
    %14 = vector.broadcast %cst_8 : f32 to vector<8x384xf32>
    %15 = arith.select %13, %8, %14 : vector<8x384xi1>, vector<8x384xf32>
    %c383_i32 = arith.constant 383 : i32
    %16 = tpu.dynamic_rotate %15 by %c383_i32 dim 1 : vector<8x384xf32>, i32 -> vector<8x384xf32>
    %c1_i32 = arith.constant 1 : i32
    %17 = vector.broadcast %c1_i32 : i32 to vector<1x384xi32>
    %18 = arith.addi %0, %17 : vector<1x384xi32>
    %c0_i32 = arith.constant 0 : i32
    %19 = vector.broadcast %c0_i32 : i32 to vector<1x384xi32>
    %20 = arith.cmpi sge, %18, %19 : vector<1x384xi32>
    %c1_i32_9 = arith.constant 1 : i32
    %21 = vector.broadcast %c1_i32_9 : i32 to vector<1x384xi32>
    %22 = arith.addi %0, %21 : vector<1x384xi32>
    %c384_i32 = arith.constant 384 : i32
    %23 = vector.broadcast %c384_i32 : i32 to vector<1x384xi32>
    %24 = arith.cmpi slt, %22, %23 : vector<1x384xi32>
    %25 = arith.andi %20, %24 : vector<1x384xi1>
    %cst_10 = arith.constant 0xFF800000 : f32
    %26 = vector.shape_cast %25 : vector<1x384xi1> to vector<1x384xi1>
    %27 = vector.broadcast %26 : vector<1x384xi1> to vector<8x384xi1>
    %28 = vector.broadcast %cst_10 : f32 to vector<8x384xf32>
    %29 = arith.select %27, %16, %28 : vector<8x384xi1>, vector<8x384xf32>
    %30 = arith.maximumf %15, %29 : vector<8x384xf32>
    %c1_i32_11 = arith.constant 1 : i32
    %31 = tpu.dynamic_rotate %15 by %c1_i32_11 dim 1 : vector<8x384xf32>, i32 -> vector<8x384xf32>
    %c-1_i32 = arith.constant -1 : i32
    %32 = vector.broadcast %c-1_i32 : i32 to vector<1x384xi32>
    %33 = arith.addi %0, %32 : vector<1x384xi32>
    %c0_i32_12 = arith.constant 0 : i32
    %34 = vector.broadcast %c0_i32_12 : i32 to vector<1x384xi32>
    %35 = arith.cmpi sge, %33, %34 : vector<1x384xi32>
    %c-1_i32_13 = arith.constant -1 : i32
    %36 = vector.broadcast %c-1_i32_13 : i32 to vector<1x384xi32>
    %37 = arith.addi %0, %36 : vector<1x384xi32>
    %c384_i32_14 = arith.constant 384 : i32
    %38 = vector.broadcast %c384_i32_14 : i32 to vector<1x384xi32>
    %39 = arith.cmpi slt, %37, %38 : vector<1x384xi32>
    %40 = arith.andi %35, %39 : vector<1x384xi1>
    %cst_15 = arith.constant 0xFF800000 : f32
    %41 = vector.shape_cast %40 : vector<1x384xi1> to vector<1x384xi1>
    %42 = vector.broadcast %41 : vector<1x384xi1> to vector<8x384xi1>
    %43 = vector.broadcast %cst_15 : f32 to vector<8x384xf32>
    %44 = arith.select %42, %31, %43 : vector<8x384xi1>, vector<8x384xf32>
    %45 = arith.maximumf %30, %44 : vector<8x384xf32>
    %c382_i32 = arith.constant 382 : i32
    %46 = tpu.dynamic_rotate %15 by %c382_i32 dim 1 : vector<8x384xf32>, i32 -> vector<8x384xf32>
    %c2_i32 = arith.constant 2 : i32
    %47 = vector.broadcast %c2_i32 : i32 to vector<1x384xi32>
    %48 = arith.addi %0, %47 : vector<1x384xi32>
    %c0_i32_16 = arith.constant 0 : i32
    %49 = vector.broadcast %c0_i32_16 : i32 to vector<1x384xi32>
    %50 = arith.cmpi sge, %48, %49 : vector<1x384xi32>
    %c2_i32_17 = arith.constant 2 : i32
    %51 = vector.broadcast %c2_i32_17 : i32 to vector<1x384xi32>
    %52 = arith.addi %0, %51 : vector<1x384xi32>
    %c384_i32_18 = arith.constant 384 : i32
    %53 = vector.broadcast %c384_i32_18 : i32 to vector<1x384xi32>
    %54 = arith.cmpi slt, %52, %53 : vector<1x384xi32>
    %55 = arith.andi %50, %54 : vector<1x384xi1>
    %cst_19 = arith.constant 0xFF800000 : f32
    %56 = vector.shape_cast %55 : vector<1x384xi1> to vector<1x384xi1>
    %57 = vector.broadcast %56 : vector<1x384xi1> to vector<8x384xi1>
    %58 = vector.broadcast %cst_19 : f32 to vector<8x384xf32>
    %59 = arith.select %57, %46, %58 : vector<8x384xi1>, vector<8x384xf32>
    %60 = arith.maximumf %45, %59 : vector<8x384xf32>
    %c2_i32_20 = arith.constant 2 : i32
    %61 = tpu.dynamic_rotate %15 by %c2_i32_20 dim 1 : vector<8x384xf32>, i32 -> vector<8x384xf32>
    %c-2_i32 = arith.constant -2 : i32
    %62 = vector.broadcast %c-2_i32 : i32 to vector<1x384xi32>
    %63 = arith.addi %0, %62 : vector<1x384xi32>
    %c0_i32_21 = arith.constant 0 : i32
    %64 = vector.broadcast %c0_i32_21 : i32 to vector<1x384xi32>
    %65 = arith.cmpi sge, %63, %64 : vector<1x384xi32>
    %c-2_i32_22 = arith.constant -2 : i32
    %66 = vector.broadcast %c-2_i32_22 : i32 to vector<1x384xi32>
    %67 = arith.addi %0, %66 : vector<1x384xi32>
    %c384_i32_23 = arith.constant 384 : i32
    %68 = vector.broadcast %c384_i32_23 : i32 to vector<1x384xi32>
    %69 = arith.cmpi slt, %67, %68 : vector<1x384xi32>
    %70 = arith.andi %65, %69 : vector<1x384xi1>
    %cst_24 = arith.constant 0xFF800000 : f32
    %71 = vector.shape_cast %70 : vector<1x384xi1> to vector<1x384xi1>
    %72 = vector.broadcast %71 : vector<1x384xi1> to vector<8x384xi1>
    %73 = vector.broadcast %cst_24 : f32 to vector<8x384xf32>
    %74 = arith.select %72, %61, %73 : vector<8x384xi1>, vector<8x384xf32>
    %75 = arith.maximumf %60, %74 : vector<8x384xf32>
    %c381_i32 = arith.constant 381 : i32
    %76 = tpu.dynamic_rotate %15 by %c381_i32 dim 1 : vector<8x384xf32>, i32 -> vector<8x384xf32>
    %c3_i32 = arith.constant 3 : i32
    %77 = vector.broadcast %c3_i32 : i32 to vector<1x384xi32>
    %78 = arith.addi %0, %77 : vector<1x384xi32>
    %c0_i32_25 = arith.constant 0 : i32
    %79 = vector.broadcast %c0_i32_25 : i32 to vector<1x384xi32>
    %80 = arith.cmpi sge, %78, %79 : vector<1x384xi32>
    %c3_i32_26 = arith.constant 3 : i32
    %81 = vector.broadcast %c3_i32_26 : i32 to vector<1x384xi32>
    %82 = arith.addi %0, %81 : vector<1x384xi32>
    %c384_i32_27 = arith.constant 384 : i32
    %83 = vector.broadcast %c384_i32_27 : i32 to vector<1x384xi32>
    %84 = arith.cmpi slt, %82, %83 : vector<1x384xi32>
    %85 = arith.andi %80, %84 : vector<1x384xi1>
    %cst_28 = arith.constant 0xFF800000 : f32
    %86 = vector.shape_cast %85 : vector<1x384xi1> to vector<1x384xi1>
    %87 = vector.broadcast %86 : vector<1x384xi1> to vector<8x384xi1>
    %88 = vector.broadcast %cst_28 : f32 to vector<8x384xf32>
    %89 = arith.select %87, %76, %88 : vector<8x384xi1>, vector<8x384xf32>
    %90 = arith.maximumf %75, %89 : vector<8x384xf32>
    %c3_i32_29 = arith.constant 3 : i32
    %91 = tpu.dynamic_rotate %15 by %c3_i32_29 dim 1 : vector<8x384xf32>, i32 -> vector<8x384xf32>
    %c-3_i32 = arith.constant -3 : i32
    %92 = vector.broadcast %c-3_i32 : i32 to vector<1x384xi32>
    %93 = arith.addi %0, %92 : vector<1x384xi32>
    %c0_i32_30 = arith.constant 0 : i32
    %94 = vector.broadcast %c0_i32_30 : i32 to vector<1x384xi32>
    %95 = arith.cmpi sge, %93, %94 : vector<1x384xi32>
    %c-3_i32_31 = arith.constant -3 : i32
    %96 = vector.broadcast %c-3_i32_31 : i32 to vector<1x384xi32>
    %97 = arith.addi %0, %96 : vector<1x384xi32>
    %c384_i32_32 = arith.constant 384 : i32
    %98 = vector.broadcast %c384_i32_32 : i32 to vector<1x384xi32>
    %99 = arith.cmpi slt, %97, %98 : vector<1x384xi32>
    %100 = arith.andi %95, %99 : vector<1x384xi1>
    %cst_33 = arith.constant 0xFF800000 : f32
    %101 = vector.shape_cast %100 : vector<1x384xi1> to vector<1x384xi1>
    %102 = vector.broadcast %101 : vector<1x384xi1> to vector<8x384xi1>
    %103 = vector.broadcast %cst_33 : f32 to vector<8x384xf32>
    %104 = arith.select %102, %91, %103 : vector<8x384xi1>, vector<8x384xf32>
    %105 = arith.maximumf %90, %104 : vector<8x384xf32>
    %c380_i32 = arith.constant 380 : i32
    %106 = tpu.dynamic_rotate %15 by %c380_i32 dim 1 : vector<8x384xf32>, i32 -> vector<8x384xf32>
    %c4_i32 = arith.constant 4 : i32
    %107 = vector.broadcast %c4_i32 : i32 to vector<1x384xi32>
    %108 = arith.addi %0, %107 : vector<1x384xi32>
    %c0_i32_34 = arith.constant 0 : i32
    %109 = vector.broadcast %c0_i32_34 : i32 to vector<1x384xi32>
    %110 = arith.cmpi sge, %108, %109 : vector<1x384xi32>
    %c4_i32_35 = arith.constant 4 : i32
    %111 = vector.broadcast %c4_i32_35 : i32 to vector<1x384xi32>
    %112 = arith.addi %0, %111 : vector<1x384xi32>
    %c384_i32_36 = arith.constant 384 : i32
    %113 = vector.broadcast %c384_i32_36 : i32 to vector<1x384xi32>
    %114 = arith.cmpi slt, %112, %113 : vector<1x384xi32>
    %115 = arith.andi %110, %114 : vector<1x384xi1>
    %cst_37 = arith.constant 0xFF800000 : f32
    %116 = vector.shape_cast %115 : vector<1x384xi1> to vector<1x384xi1>
    %117 = vector.broadcast %116 : vector<1x384xi1> to vector<8x384xi1>
    %118 = vector.broadcast %cst_37 : f32 to vector<8x384xf32>
    %119 = arith.select %117, %106, %118 : vector<8x384xi1>, vector<8x384xf32>
    %120 = arith.maximumf %105, %119 : vector<8x384xf32>
    %c4_i32_38 = arith.constant 4 : i32
    %121 = tpu.dynamic_rotate %15 by %c4_i32_38 dim 1 : vector<8x384xf32>, i32 -> vector<8x384xf32>
    %c-4_i32 = arith.constant -4 : i32
    %122 = vector.broadcast %c-4_i32 : i32 to vector<1x384xi32>
    %123 = arith.addi %0, %122 : vector<1x384xi32>
    %c0_i32_39 = arith.constant 0 : i32
    %124 = vector.broadcast %c0_i32_39 : i32 to vector<1x384xi32>
    %125 = arith.cmpi sge, %123, %124 : vector<1x384xi32>
    %c-4_i32_40 = arith.constant -4 : i32
    %126 = vector.broadcast %c-4_i32_40 : i32 to vector<1x384xi32>
    %127 = arith.addi %0, %126 : vector<1x384xi32>
    %c384_i32_41 = arith.constant 384 : i32
    %128 = vector.broadcast %c384_i32_41 : i32 to vector<1x384xi32>
    %129 = arith.cmpi slt, %127, %128 : vector<1x384xi32>
    %130 = arith.andi %125, %129 : vector<1x384xi1>
    %cst_42 = arith.constant 0xFF800000 : f32
    %131 = vector.shape_cast %130 : vector<1x384xi1> to vector<1x384xi1>
    %132 = vector.broadcast %131 : vector<1x384xi1> to vector<8x384xi1>
    %133 = vector.broadcast %cst_42 : f32 to vector<8x384xf32>
    %134 = arith.select %132, %121, %133 : vector<8x384xi1>, vector<8x384xf32>
    %135 = arith.maximumf %120, %134 : vector<8x384xf32>
    %c364_i32 = arith.constant 364 : i32
    %136 = tpu.dynamic_rotate %135 by %c364_i32 dim 1 : vector<8x384xf32>, i32 -> vector<8x384xf32>
    %c20_i32 = arith.constant 20 : i32
    %137 = vector.broadcast %c20_i32 : i32 to vector<1x384xi32>
    %138 = arith.addi %0, %137 : vector<1x384xi32>
    %c0_i32_43 = arith.constant 0 : i32
    %139 = vector.broadcast %c0_i32_43 : i32 to vector<1x384xi32>
    %140 = arith.cmpi sge, %138, %139 : vector<1x384xi32>
    %c20_i32_44 = arith.constant 20 : i32
    %141 = vector.broadcast %c20_i32_44 : i32 to vector<1x384xi32>
    %142 = arith.addi %0, %141 : vector<1x384xi32>
    %c384_i32_45 = arith.constant 384 : i32
    %143 = vector.broadcast %c384_i32_45 : i32 to vector<1x384xi32>
    %144 = arith.cmpi slt, %142, %143 : vector<1x384xi32>
    %145 = arith.andi %140, %144 : vector<1x384xi1>
    %cst_46 = arith.constant 0xFF800000 : f32
    %146 = vector.shape_cast %145 : vector<1x384xi1> to vector<1x384xi1>
    %147 = vector.broadcast %146 : vector<1x384xi1> to vector<8x384xi1>
    %148 = vector.broadcast %cst_46 : f32 to vector<8x384xf32>
    %149 = arith.select %147, %136, %148 : vector<8x384xi1>, vector<8x384xf32>
    %150 = arith.maximumf %135, %149 : vector<8x384xf32>
    %c20_i32_47 = arith.constant 20 : i32
    %151 = tpu.dynamic_rotate %135 by %c20_i32_47 dim 1 : vector<8x384xf32>, i32 -> vector<8x384xf32>
    %c-20_i32 = arith.constant -20 : i32
    %152 = vector.broadcast %c-20_i32 : i32 to vector<1x384xi32>
    %153 = arith.addi %0, %152 : vector<1x384xi32>
    %c0_i32_48 = arith.constant 0 : i32
    %154 = vector.broadcast %c0_i32_48 : i32 to vector<1x384xi32>
    %155 = arith.cmpi sge, %153, %154 : vector<1x384xi32>
    %c-20_i32_49 = arith.constant -20 : i32
    %156 = vector.broadcast %c-20_i32_49 : i32 to vector<1x384xi32>
    %157 = arith.addi %0, %156 : vector<1x384xi32>
    %c384_i32_50 = arith.constant 384 : i32
    %158 = vector.broadcast %c384_i32_50 : i32 to vector<1x384xi32>
    %159 = arith.cmpi slt, %157, %158 : vector<1x384xi32>
    %160 = arith.andi %155, %159 : vector<1x384xi1>
    %cst_51 = arith.constant 0xFF800000 : f32
    %161 = vector.shape_cast %160 : vector<1x384xi1> to vector<1x384xi1>
    %162 = vector.broadcast %161 : vector<1x384xi1> to vector<8x384xi1>
    %163 = vector.broadcast %cst_51 : f32 to vector<8x384xf32>
    %164 = arith.select %162, %151, %163 : vector<8x384xi1>, vector<8x384xf32>
    %165 = arith.maximumf %150, %164 : vector<8x384xf32>
    %c344_i32 = arith.constant 344 : i32
    %166 = tpu.dynamic_rotate %135 by %c344_i32 dim 1 : vector<8x384xf32>, i32 -> vector<8x384xf32>
    %c40_i32 = arith.constant 40 : i32
    %167 = vector.broadcast %c40_i32 : i32 to vector<1x384xi32>
    %168 = arith.addi %0, %167 : vector<1x384xi32>
    %c0_i32_52 = arith.constant 0 : i32
    %169 = vector.broadcast %c0_i32_52 : i32 to vector<1x384xi32>
    %170 = arith.cmpi sge, %168, %169 : vector<1x384xi32>
    %c40_i32_53 = arith.constant 40 : i32
    %171 = vector.broadcast %c40_i32_53 : i32 to vector<1x384xi32>
    %172 = arith.addi %0, %171 : vector<1x384xi32>
    %c384_i32_54 = arith.constant 384 : i32
    %173 = vector.broadcast %c384_i32_54 : i32 to vector<1x384xi32>
    %174 = arith.cmpi slt, %172, %173 : vector<1x384xi32>
    %175 = arith.andi %170, %174 : vector<1x384xi1>
    %cst_55 = arith.constant 0xFF800000 : f32
    %176 = vector.shape_cast %175 : vector<1x384xi1> to vector<1x384xi1>
    %177 = vector.broadcast %176 : vector<1x384xi1> to vector<8x384xi1>
    %178 = vector.broadcast %cst_55 : f32 to vector<8x384xf32>
    %179 = arith.select %177, %166, %178 : vector<8x384xi1>, vector<8x384xf32>
    %180 = arith.maximumf %165, %179 : vector<8x384xf32>
    %c40_i32_56 = arith.constant 40 : i32
    %181 = tpu.dynamic_rotate %135 by %c40_i32_56 dim 1 : vector<8x384xf32>, i32 -> vector<8x384xf32>
    %c-40_i32 = arith.constant -40 : i32
    %182 = vector.broadcast %c-40_i32 : i32 to vector<1x384xi32>
    %183 = arith.addi %0, %182 : vector<1x384xi32>
    %c0_i32_57 = arith.constant 0 : i32
    %184 = vector.broadcast %c0_i32_57 : i32 to vector<1x384xi32>
    %185 = arith.cmpi sge, %183, %184 : vector<1x384xi32>
    %c-40_i32_58 = arith.constant -40 : i32
    %186 = vector.broadcast %c-40_i32_58 : i32 to vector<1x384xi32>
    %187 = arith.addi %0, %186 : vector<1x384xi32>
    %c384_i32_59 = arith.constant 384 : i32
    %188 = vector.broadcast %c384_i32_59 : i32 to vector<1x384xi32>
    %189 = arith.cmpi slt, %187, %188 : vector<1x384xi32>
    %190 = arith.andi %185, %189 : vector<1x384xi1>
    %cst_60 = arith.constant 0xFF800000 : f32
    %191 = vector.shape_cast %190 : vector<1x384xi1> to vector<1x384xi1>
    %192 = vector.broadcast %191 : vector<1x384xi1> to vector<8x384xi1>
    %193 = vector.broadcast %cst_60 : f32 to vector<8x384xf32>
    %194 = arith.select %192, %181, %193 : vector<8x384xi1>, vector<8x384xf32>
    %195 = arith.maximumf %180, %194 : vector<8x384xf32>
    %c324_i32 = arith.constant 324 : i32
    %196 = tpu.dynamic_rotate %135 by %c324_i32 dim 1 : vector<8x384xf32>, i32 -> vector<8x384xf32>
    %c60_i32 = arith.constant 60 : i32
    %197 = vector.broadcast %c60_i32 : i32 to vector<1x384xi32>
    %198 = arith.addi %0, %197 : vector<1x384xi32>
    %c0_i32_61 = arith.constant 0 : i32
    %199 = vector.broadcast %c0_i32_61 : i32 to vector<1x384xi32>
    %200 = arith.cmpi sge, %198, %199 : vector<1x384xi32>
    %c60_i32_62 = arith.constant 60 : i32
    %201 = vector.broadcast %c60_i32_62 : i32 to vector<1x384xi32>
    %202 = arith.addi %0, %201 : vector<1x384xi32>
    %c384_i32_63 = arith.constant 384 : i32
    %203 = vector.broadcast %c384_i32_63 : i32 to vector<1x384xi32>
    %204 = arith.cmpi slt, %202, %203 : vector<1x384xi32>
    %205 = arith.andi %200, %204 : vector<1x384xi1>
    %cst_64 = arith.constant 0xFF800000 : f32
    %206 = vector.shape_cast %205 : vector<1x384xi1> to vector<1x384xi1>
    %207 = vector.broadcast %206 : vector<1x384xi1> to vector<8x384xi1>
    %208 = vector.broadcast %cst_64 : f32 to vector<8x384xf32>
    %209 = arith.select %207, %196, %208 : vector<8x384xi1>, vector<8x384xf32>
    %210 = arith.maximumf %195, %209 : vector<8x384xf32>
    %c60_i32_65 = arith.constant 60 : i32
    %211 = tpu.dynamic_rotate %135 by %c60_i32_65 dim 1 : vector<8x384xf32>, i32 -> vector<8x384xf32>
    %c-60_i32 = arith.constant -60 : i32
    %212 = vector.broadcast %c-60_i32 : i32 to vector<1x384xi32>
    %213 = arith.addi %0, %212 : vector<1x384xi32>
    %c0_i32_66 = arith.constant 0 : i32
    %214 = vector.broadcast %c0_i32_66 : i32 to vector<1x384xi32>
    %215 = arith.cmpi sge, %213, %214 : vector<1x384xi32>
    %c-60_i32_67 = arith.constant -60 : i32
    %216 = vector.broadcast %c-60_i32_67 : i32 to vector<1x384xi32>
    %217 = arith.addi %0, %216 : vector<1x384xi32>
    %c384_i32_68 = arith.constant 384 : i32
    %218 = vector.broadcast %c384_i32_68 : i32 to vector<1x384xi32>
    %219 = arith.cmpi slt, %217, %218 : vector<1x384xi32>
    %220 = arith.andi %215, %219 : vector<1x384xi1>
    %cst_69 = arith.constant 0xFF800000 : f32
    %221 = vector.shape_cast %220 : vector<1x384xi1> to vector<1x384xi1>
    %222 = vector.broadcast %221 : vector<1x384xi1> to vector<8x384xi1>
    %223 = vector.broadcast %cst_69 : f32 to vector<8x384xf32>
    %224 = arith.select %222, %211, %223 : vector<8x384xi1>, vector<8x384xf32>
    %225 = arith.maximumf %210, %224 : vector<8x384xf32>
    %c304_i32 = arith.constant 304 : i32
    %226 = tpu.dynamic_rotate %135 by %c304_i32 dim 1 : vector<8x384xf32>, i32 -> vector<8x384xf32>
    %c80_i32 = arith.constant 80 : i32
    %227 = vector.broadcast %c80_i32 : i32 to vector<1x384xi32>
    %228 = arith.addi %0, %227 : vector<1x384xi32>
    %c0_i32_70 = arith.constant 0 : i32
    %229 = vector.broadcast %c0_i32_70 : i32 to vector<1x384xi32>
    %230 = arith.cmpi sge, %228, %229 : vector<1x384xi32>
    %c80_i32_71 = arith.constant 80 : i32
    %231 = vector.broadcast %c80_i32_71 : i32 to vector<1x384xi32>
    %232 = arith.addi %0, %231 : vector<1x384xi32>
    %c384_i32_72 = arith.constant 384 : i32
    %233 = vector.broadcast %c384_i32_72 : i32 to vector<1x384xi32>
    %234 = arith.cmpi slt, %232, %233 : vector<1x384xi32>
    %235 = arith.andi %230, %234 : vector<1x384xi1>
    %cst_73 = arith.constant 0xFF800000 : f32
    %236 = vector.shape_cast %235 : vector<1x384xi1> to vector<1x384xi1>
    %237 = vector.broadcast %236 : vector<1x384xi1> to vector<8x384xi1>
    %238 = vector.broadcast %cst_73 : f32 to vector<8x384xf32>
    %239 = arith.select %237, %226, %238 : vector<8x384xi1>, vector<8x384xf32>
    %240 = arith.maximumf %225, %239 : vector<8x384xf32>
    %c80_i32_74 = arith.constant 80 : i32
    %241 = tpu.dynamic_rotate %135 by %c80_i32_74 dim 1 : vector<8x384xf32>, i32 -> vector<8x384xf32>
    %c-80_i32 = arith.constant -80 : i32
    %242 = vector.broadcast %c-80_i32 : i32 to vector<1x384xi32>
    %243 = arith.addi %0, %242 : vector<1x384xi32>
    %c0_i32_75 = arith.constant 0 : i32
    %244 = vector.broadcast %c0_i32_75 : i32 to vector<1x384xi32>
    %245 = arith.cmpi sge, %243, %244 : vector<1x384xi32>
    %c-80_i32_76 = arith.constant -80 : i32
    %246 = vector.broadcast %c-80_i32_76 : i32 to vector<1x384xi32>
    %247 = arith.addi %0, %246 : vector<1x384xi32>
    %c384_i32_77 = arith.constant 384 : i32
    %248 = vector.broadcast %c384_i32_77 : i32 to vector<1x384xi32>
    %249 = arith.cmpi slt, %247, %248 : vector<1x384xi32>
    %250 = arith.andi %245, %249 : vector<1x384xi1>
    %cst_78 = arith.constant 0xFF800000 : f32
    %251 = vector.shape_cast %250 : vector<1x384xi1> to vector<1x384xi1>
    %252 = vector.broadcast %251 : vector<1x384xi1> to vector<8x384xi1>
    %253 = vector.broadcast %cst_78 : f32 to vector<8x384xf32>
    %254 = arith.select %252, %241, %253 : vector<8x384xi1>, vector<8x384xf32>
    %255 = arith.maximumf %240, %254 : vector<8x384xf32>
    %c0_79 = arith.constant 0 : index
    %c0_80 = arith.constant 0 : index
    %c0_81 = arith.constant 0 : index
    %256 = vector.load %arg5[%c0_79, %c0_80, %c0_81] : memref<1x8x384xf32, #tpu.memory_space<vmem>>, vector<1x8x384xf32>
    %257 = vector.shape_cast %256 : vector<1x8x384xf32> to vector<8x384xf32>
    %258 = vector.shape_cast %255 : vector<8x384xf32> to vector<1x8x384xf32>
    tpu.vector_store %arg5[%c0_79, %c0_80, %c0_81], %258 {strides = array<i32>} : memref<1x8x384xf32, #tpu.memory_space<vmem>>, vector<1x8x384xf32>,
    return
  }
  func.func @transform_0(%arg0: i32) -> (i32, i32, i32) {
    %c0_i32 = arith.constant 0 : i32
    %c0_i32_0 = arith.constant 0 : i32
    %c0_i32_1 = arith.constant 0 : i32
    return %arg0, %c0_i32, %c0_i32_0 : i32, i32, i32
  }
  func.func @transform_1(%arg0: i32) -> (i32, i32) {
    %c0_i32 = arith.constant 0 : i32
    %c0_i32_0 = arith.constant 0 : i32
    %c0_i32_1 = arith.constant 0 : i32
    return %c0_i32, %c0_i32_0 : i32, i32
  }
  func.func @transform_2(%arg0: i32) -> (i32, i32) {
    %c0_i32 = arith.constant 0 : i32
    %c0_i32_0 = arith.constant 0 : i32
    %c0_i32_1 = arith.constant 0 : i32
    return %c0_i32, %c0_i32_0 : i32, i32
  }
  func.func @transform_3(%arg0: i32) -> (i32, i32) {
    %c0_i32 = arith.constant 0 : i32
    %c0_i32_0 = arith.constant 0 : i32
    %c0_i32_1 = arith.constant 0 : i32
    return %c0_i32, %c0_i32_0 : i32, i32
  }
  func.func @transform_4(%arg0: i32) -> (i32, i32, i32) {
    %c0_i32 = arith.constant 0 : i32
    %c0_i32_0 = arith.constant 0 : i32
    %c0_i32_1 = arith.constant 0 : i32
    return %arg0, %c0_i32, %c0_i32_0 : i32, i32, i32
  }
}

module attributes {stable_mosaic.version = 11 : i64} {
  func.func @_conv_lrelu_stats_kernel(%arg0: i32, %arg1: i32, %arg2: memref<1x4x384xf32, #tpu.memory_space<vmem>>, %arg3: memref<1x4x384xf32, #tpu.memory_space<vmem>>, %arg4: memref<8x36xf32, #tpu.memory_space<vmem>>, %arg5: memref<8x1xf32, #tpu.memory_space<vmem>>, %arg6: memref<1x384xf32, #tpu.memory_space<vmem>>, %arg7: memref<1x8x384xf32, #tpu.memory_space<vmem>>, %arg8: memref<1x1x8x1xf32, #tpu.memory_space<vmem>>, %arg9: memref<1x1x8x1xf32, #tpu.memory_space<vmem>>, %arg10: memref<36x384xf32, #tpu.memory_space<vmem>>) attributes {dimension_semantics = [#tpu.dimension_semantics<parallel>, #tpu.dimension_semantics<parallel>], iteration_bounds = array<i64: 2, 1>, scalar_prefetch = 0 : i64, scratch_operands = 1 : i64, tpu.core_type = #tpu.core_type<tc>, window_params = [{transform_indices = @transform_0, window_bounds = array<i64: 1, 4, 384>}, {transform_indices = @transform_1, window_bounds = array<i64: 1, 4, 384>}, {pipeline_mode = #tpu.pipeline_mode<synchronous>, transform_indices = @transform_2, window_bounds = array<i64: 8, 36>}, {pipeline_mode = #tpu.pipeline_mode<synchronous>, transform_indices = @transform_3, window_bounds = array<i64: 8, 1>}, {transform_indices = @transform_4, window_bounds = array<i64: 1, 384>}, {transform_indices = @transform_5, window_bounds = array<i64: 1, 8, 384>}, {transform_indices = @transform_6, window_bounds = array<i64: 1, 1, 8, 1>}, {transform_indices = @transform_7, window_bounds = array<i64: 1, 1, 8, 1>}]} {
    %c0 = arith.constant 0 : index
    %c0_0 = arith.constant 0 : index
    %c0_1 = arith.constant 0 : index
    %0 = vector.load %arg2[%c0, %c0_0, %c0_1] : memref<1x4x384xf32, #tpu.memory_space<vmem>>, vector<1x4x384xf32>
    %1 = vector.shape_cast %0 : vector<1x4x384xf32> to vector<4x384xf32>
    %c0_2 = arith.constant 0 : index
    %c0_3 = arith.constant 0 : index
    %2 = vector.load %arg10[%c0_2, %c0_3] : memref<36x384xf32, #tpu.memory_space<vmem>>, vector<4x384xf32>
    tpu.vector_store %arg10[%c0_2, %c0_3], %1 {strides = array<i32>} : memref<36x384xf32, #tpu.memory_space<vmem>>, vector<4x384xf32>,
    %c0_4 = arith.constant 0 : index
    %c0_5 = arith.constant 0 : index
    %c1 = arith.constant 1 : index
    %3 = vector.load %arg2[%c0_4, %c0_5, %c1] : memref<1x4x384xf32, #tpu.memory_space<vmem>>, vector<1x4x383xf32>
    %4 = vector.shape_cast %3 : vector<1x4x383xf32> to vector<4x383xf32>
    %c4 = arith.constant 4 : index
    %c0_6 = arith.constant 0 : index
    %5 = vector.load %arg10[%c4, %c0_6] : memref<36x384xf32, #tpu.memory_space<vmem>>, vector<4x383xf32>
    tpu.vector_store %arg10[%c4, %c0_6], %4 {strides = array<i32>} : memref<36x384xf32, #tpu.memory_space<vmem>>, vector<4x383xf32>,
    %c0_7 = arith.constant 0 : index
    %c0_8 = arith.constant 0 : index
    %c0_9 = arith.constant 0 : index
    %6 = vector.load %arg3[%c0_7, %c0_8, %c0_9] : memref<1x4x384xf32, #tpu.memory_space<vmem>>, vector<1x4x1xf32>
    %7 = vector.shape_cast %6 : vector<1x4x1xf32> to vector<4x1xf32>
    %c4_10 = arith.constant 4 : index
    %c383 = arith.constant 383 : index
    %8 = vector.load %arg10[%c4_10, %c383] : memref<36x384xf32, #tpu.memory_space<vmem>>, vector<4x1xf32>
    tpu.vector_store %arg10[%c4_10, %c383], %7 {strides = array<i32>} : memref<36x384xf32, #tpu.memory_space<vmem>>, vector<4x1xf32>,
    %c0_11 = arith.constant 0 : index
    %c0_12 = arith.constant 0 : index
    %c2 = arith.constant 2 : index
    %9 = vector.load %arg2[%c0_11, %c0_12, %c2] : memref<1x4x384xf32, #tpu.memory_space<vmem>>, vector<1x4x382xf32>
    %10 = vector.shape_cast %9 : vector<1x4x382xf32> to vector<4x382xf32>
    %c8 = arith.constant 8 : index
    %c0_13 = arith.constant 0 : index
    %11 = vector.load %arg10[%c8, %c0_13] : memref<36x384xf32, #tpu.memory_space<vmem>>, vector<4x382xf32>
    tpu.vector_store %arg10[%c8, %c0_13], %10 {strides = array<i32>} : memref<36x384xf32, #tpu.memory_space<vmem>>, vector<4x382xf32>,
    %c0_14 = arith.constant 0 : index
    %c0_15 = arith.constant 0 : index
    %c0_16 = arith.constant 0 : index
    %12 = vector.load %arg3[%c0_14, %c0_15, %c0_16] : memref<1x4x384xf32, #tpu.memory_space<vmem>>, vector<1x4x2xf32>
    %13 = vector.shape_cast %12 : vector<1x4x2xf32> to vector<4x2xf32>
    %c8_17 = arith.constant 8 : index
    %c382 = arith.constant 382 : index
    %14 = vector.load %arg10[%c8_17, %c382] : memref<36x384xf32, #tpu.memory_space<vmem>>, vector<4x2xf32>
    tpu.vector_store %arg10[%c8_17, %c382], %13 {strides = array<i32>} : memref<36x384xf32, #tpu.memory_space<vmem>>, vector<4x2xf32>,
    %c0_18 = arith.constant 0 : index
    %c0_19 = arith.constant 0 : index
    %c20 = arith.constant 20 : index
    %15 = vector.load %arg2[%c0_18, %c0_19, %c20] : memref<1x4x384xf32, #tpu.memory_space<vmem>>, vector<1x4x364xf32>
    %16 = vector.shape_cast %15 : vector<1x4x364xf32> to vector<4x364xf32>
    %c12 = arith.constant 12 : index
    %c0_20 = arith.constant 0 : index
    %17 = vector.load %arg10[%c12, %c0_20] : memref<36x384xf32, #tpu.memory_space<vmem>>, vector<4x364xf32>
    tpu.vector_store %arg10[%c12, %c0_20], %16 {strides = array<i32>} : memref<36x384xf32, #tpu.memory_space<vmem>>, vector<4x364xf32>,
    %c0_21 = arith.constant 0 : index
    %c0_22 = arith.constant 0 : index
    %c0_23 = arith.constant 0 : index
    %18 = vector.load %arg3[%c0_21, %c0_22, %c0_23] : memref<1x4x384xf32, #tpu.memory_space<vmem>>, vector<1x4x20xf32>
    %19 = vector.shape_cast %18 : vector<1x4x20xf32> to vector<4x20xf32>
    %c12_24 = arith.constant 12 : index
    %c364 = arith.constant 364 : index
    %20 = vector.load %arg10[%c12_24, %c364] : memref<36x384xf32, #tpu.memory_space<vmem>>, vector<4x20xf32>
    tpu.vector_store %arg10[%c12_24, %c364], %19 {strides = array<i32>} : memref<36x384xf32, #tpu.memory_space<vmem>>, vector<4x20xf32>,
    %c0_25 = arith.constant 0 : index
    %c0_26 = arith.constant 0 : index
    %c21 = arith.constant 21 : index
    %21 = vector.load %arg2[%c0_25, %c0_26, %c21] : memref<1x4x384xf32, #tpu.memory_space<vmem>>, vector<1x4x363xf32>
    %22 = vector.shape_cast %21 : vector<1x4x363xf32> to vector<4x363xf32>
    %c16 = arith.constant 16 : index
    %c0_27 = arith.constant 0 : index
    %23 = vector.load %arg10[%c16, %c0_27] : memref<36x384xf32, #tpu.memory_space<vmem>>, vector<4x363xf32>
    tpu.vector_store %arg10[%c16, %c0_27], %22 {strides = array<i32>} : memref<36x384xf32, #tpu.memory_space<vmem>>, vector<4x363xf32>,
    %c0_28 = arith.constant 0 : index
    %c0_29 = arith.constant 0 : index
    %c0_30 = arith.constant 0 : index
    %24 = vector.load %arg3[%c0_28, %c0_29, %c0_30] : memref<1x4x384xf32, #tpu.memory_space<vmem>>, vector<1x4x21xf32>
    %25 = vector.shape_cast %24 : vector<1x4x21xf32> to vector<4x21xf32>
    %c16_31 = arith.constant 16 : index
    %c363 = arith.constant 363 : index
    %26 = vector.load %arg10[%c16_31, %c363] : memref<36x384xf32, #tpu.memory_space<vmem>>, vector<4x21xf32>
    tpu.vector_store %arg10[%c16_31, %c363], %25 {strides = array<i32>} : memref<36x384xf32, #tpu.memory_space<vmem>>, vector<4x21xf32>,
    %c0_32 = arith.constant 0 : index
    %c0_33 = arith.constant 0 : index
    %c22 = arith.constant 22 : index
    %27 = vector.load %arg2[%c0_32, %c0_33, %c22] : memref<1x4x384xf32, #tpu.memory_space<vmem>>, vector<1x4x362xf32>
    %28 = vector.shape_cast %27 : vector<1x4x362xf32> to vector<4x362xf32>
    %c20_34 = arith.constant 20 : index
    %c0_35 = arith.constant 0 : index
    %29 = vector.load %arg10[%c20_34, %c0_35] : memref<36x384xf32, #tpu.memory_space<vmem>>, vector<4x362xf32>
    tpu.vector_store %arg10[%c20_34, %c0_35], %28 {strides = array<i32>} : memref<36x384xf32, #tpu.memory_space<vmem>>, vector<4x362xf32>,
    %c0_36 = arith.constant 0 : index
    %c0_37 = arith.constant 0 : index
    %c0_38 = arith.constant 0 : index
    %30 = vector.load %arg3[%c0_36, %c0_37, %c0_38] : memref<1x4x384xf32, #tpu.memory_space<vmem>>, vector<1x4x22xf32>
    %31 = vector.shape_cast %30 : vector<1x4x22xf32> to vector<4x22xf32>
    %c20_39 = arith.constant 20 : index
    %c362 = arith.constant 362 : index
    %32 = vector.load %arg10[%c20_39, %c362] : memref<36x384xf32, #tpu.memory_space<vmem>>, vector<4x22xf32>
    tpu.vector_store %arg10[%c20_39, %c362], %31 {strides = array<i32>} : memref<36x384xf32, #tpu.memory_space<vmem>>, vector<4x22xf32>,
    %c0_40 = arith.constant 0 : index
    %c0_41 = arith.constant 0 : index
    %c40 = arith.constant 40 : index
    %33 = vector.load %arg2[%c0_40, %c0_41, %c40] : memref<1x4x384xf32, #tpu.memory_space<vmem>>, vector<1x4x344xf32>
    %34 = vector.shape_cast %33 : vector<1x4x344xf32> to vector<4x344xf32>
    %c24 = arith.constant 24 : index
    %c0_42 = arith.constant 0 : index
    %35 = vector.load %arg10[%c24, %c0_42] : memref<36x384xf32, #tpu.memory_space<vmem>>, vector<4x344xf32>
    tpu.vector_store %arg10[%c24, %c0_42], %34 {strides = array<i32>} : memref<36x384xf32, #tpu.memory_space<vmem>>, vector<4x344xf32>,
    %c0_43 = arith.constant 0 : index
    %c0_44 = arith.constant 0 : index
    %c0_45 = arith.constant 0 : index
    %36 = vector.load %arg3[%c0_43, %c0_44, %c0_45] : memref<1x4x384xf32, #tpu.memory_space<vmem>>, vector<1x4x40xf32>
    %37 = vector.shape_cast %36 : vector<1x4x40xf32> to vector<4x40xf32>
    %c24_46 = arith.constant 24 : index
    %c344 = arith.constant 344 : index
    %38 = vector.load %arg10[%c24_46, %c344] : memref<36x384xf32, #tpu.memory_space<vmem>>, vector<4x40xf32>
    tpu.vector_store %arg10[%c24_46, %c344], %37 {strides = array<i32>} : memref<36x384xf32, #tpu.memory_space<vmem>>, vector<4x40xf32>,
    %c0_47 = arith.constant 0 : index
    %c0_48 = arith.constant 0 : index
    %c41 = arith.constant 41 : index
    %39 = vector.load %arg2[%c0_47, %c0_48, %c41] : memref<1x4x384xf32, #tpu.memory_space<vmem>>, vector<1x4x343xf32>
    %40 = vector.shape_cast %39 : vector<1x4x343xf32> to vector<4x343xf32>
    %c28 = arith.constant 28 : index
    %c0_49 = arith.constant 0 : index
    %41 = vector.load %arg10[%c28, %c0_49] : memref<36x384xf32, #tpu.memory_space<vmem>>, vector<4x343xf32>
    tpu.vector_store %arg10[%c28, %c0_49], %40 {strides = array<i32>} : memref<36x384xf32, #tpu.memory_space<vmem>>, vector<4x343xf32>,
    %c0_50 = arith.constant 0 : index
    %c0_51 = arith.constant 0 : index
    %c0_52 = arith.constant 0 : index
    %42 = vector.load %arg3[%c0_50, %c0_51, %c0_52] : memref<1x4x384xf32, #tpu.memory_space<vmem>>, vector<1x4x41xf32>
    %43 = vector.shape_cast %42 : vector<1x4x41xf32> to vector<4x41xf32>
    %c28_53 = arith.constant 28 : index
    %c343 = arith.constant 343 : index
    %44 = vector.load %arg10[%c28_53, %c343] : memref<36x384xf32, #tpu.memory_space<vmem>>, vector<4x41xf32>
    tpu.vector_store %arg10[%c28_53, %c343], %43 {strides = array<i32>} : memref<36x384xf32, #tpu.memory_space<vmem>>, vector<4x41xf32>,
    %c0_54 = arith.constant 0 : index
    %c0_55 = arith.constant 0 : index
    %c42 = arith.constant 42 : index
    %45 = vector.load %arg2[%c0_54, %c0_55, %c42] : memref<1x4x384xf32, #tpu.memory_space<vmem>>, vector<1x4x342xf32>
    %46 = vector.shape_cast %45 : vector<1x4x342xf32> to vector<4x342xf32>
    %c32 = arith.constant 32 : index
    %c0_56 = arith.constant 0 : index
    %47 = vector.load %arg10[%c32, %c0_56] : memref<36x384xf32, #tpu.memory_space<vmem>>, vector<4x342xf32>
    tpu.vector_store %arg10[%c32, %c0_56], %46 {strides = array<i32>} : memref<36x384xf32, #tpu.memory_space<vmem>>, vector<4x342xf32>,
    %c0_57 = arith.constant 0 : index
    %c0_58 = arith.constant 0 : index
    %c0_59 = arith.constant 0 : index
    %48 = vector.load %arg3[%c0_57, %c0_58, %c0_59] : memref<1x4x384xf32, #tpu.memory_space<vmem>>, vector<1x4x42xf32>
    %49 = vector.shape_cast %48 : vector<1x4x42xf32> to vector<4x42xf32>
    %c32_60 = arith.constant 32 : index
    %c342 = arith.constant 342 : index
    %50 = vector.load %arg10[%c32_60, %c342] : memref<36x384xf32, #tpu.memory_space<vmem>>, vector<4x42xf32>
    tpu.vector_store %arg10[%c32_60, %c342], %49 {strides = array<i32>} : memref<36x384xf32, #tpu.memory_space<vmem>>, vector<4x42xf32>,
    %c0_61 = arith.constant 0 : index
    %c0_62 = arith.constant 0 : index
    %51 = vector.load %arg4[%c0_61, %c0_62] : memref<8x36xf32, #tpu.memory_space<vmem>>, vector<8x36xf32>
    %c0_63 = arith.constant 0 : index
    %c0_64 = arith.constant 0 : index
    %52 = vector.load %arg10[%c0_63, %c0_64] : memref<36x384xf32, #tpu.memory_space<vmem>>, vector<36x384xf32>
    %cst = arith.constant dense<0.000000e+00> : vector<8x384xf32>
    %53 = tpu.matmul %51, %52, %cst {dimension_numbers = #tpu.dot_dimension_numbers<[1], [0], [0], [1], [0, 0, 1, 1], [], []>} : vector<8x36xf32>, vector<36x384xf32>, vector<8x384xf32> -> vector<8x384xf32>
    %c0_65 = arith.constant 0 : index
    %c0_66 = arith.constant 0 : index
    %54 = vector.load %arg5[%c0_65, %c0_66] : memref<8x1xf32, #tpu.memory_space<vmem>>, vector<8x1xf32>
    %55 = vector.broadcast %54 : vector<8x1xf32> to vector<8x384xf32>
    %56 = arith.addf %53, %55 : vector<8x384xf32>
    %cst_67 = arith.constant 0.000000e+00 : f32
    %57 = vector.broadcast %cst_67 : f32 to vector<8x384xf32>
    %58 = arith.cmpf oge, %56, %57 : vector<8x384xf32>
    %cst_68 = arith.constant 0.00999999977 : f32
    %59 = vector.broadcast %cst_68 : f32 to vector<8x384xf32>
    %60 = arith.mulf %59, %56 : vector<8x384xf32>
    %61 = arith.select %58, %56, %60 : vector<8x384xi1>, vector<8x384xf32>
    %c0_69 = arith.constant 0 : index
    %c0_70 = arith.constant 0 : index
    %c0_71 = arith.constant 0 : index
    %62 = vector.load %arg7[%c0_69, %c0_70, %c0_71] : memref<1x8x384xf32, #tpu.memory_space<vmem>>, vector<1x8x384xf32>
    %63 = vector.shape_cast %62 : vector<1x8x384xf32> to vector<8x384xf32>
    %64 = vector.shape_cast %61 : vector<8x384xf32> to vector<1x8x384xf32>
    tpu.vector_store %arg7[%c0_69, %c0_70, %c0_71], %64 {strides = array<i32>} : memref<1x8x384xf32, #tpu.memory_space<vmem>>, vector<1x8x384xf32>,
    %c0_72 = arith.constant 0 : index
    %c0_73 = arith.constant 0 : index
    %65 = vector.load %arg6[%c0_72, %c0_73] : memref<1x384xf32, #tpu.memory_space<vmem>>, vector<1x384xf32>
    %66 = vector.broadcast %65 : vector<1x384xf32> to vector<8x384xf32>
    %67 = arith.mulf %61, %66 : vector<8x384xf32>
    %cst_74 = arith.constant dense<0.000000e+00> : vector<8xf32>
    %68 = vector.multi_reduction <add>, %67, %cst_74 [1] : vector<8x384xf32> to vector<8xf32>
    %69 = vector.shape_cast %68 : vector<8xf32> to vector<8x1xf32>
    %c0_75 = arith.constant 0 : index
    %c0_76 = arith.constant 0 : index
    %c0_77 = arith.constant 0 : index
    %c0_78 = arith.constant 0 : index
    %70 = vector.load %arg8[%c0_75, %c0_76, %c0_77, %c0_78] : memref<1x1x8x1xf32, #tpu.memory_space<vmem>>, vector<1x1x8x1xf32>
    %71 = vector.shape_cast %70 : vector<1x1x8x1xf32> to vector<8x1xf32>
    %72 = vector.shape_cast %69 : vector<8x1xf32> to vector<1x1x8x1xf32>
    tpu.vector_store %arg8[%c0_75, %c0_76, %c0_77, %c0_78], %72 {strides = array<i32>} : memref<1x1x8x1xf32, #tpu.memory_space<vmem>>, vector<1x1x8x1xf32>,
    %73 = arith.mulf %67, %67 : vector<8x384xf32>
    %cst_79 = arith.constant dense<0.000000e+00> : vector<8xf32>
    %74 = vector.multi_reduction <add>, %73, %cst_79 [1] : vector<8x384xf32> to vector<8xf32>
    %75 = vector.shape_cast %74 : vector<8xf32> to vector<8x1xf32>
    %c0_80 = arith.constant 0 : index
    %c0_81 = arith.constant 0 : index
    %c0_82 = arith.constant 0 : index
    %c0_83 = arith.constant 0 : index
    %76 = vector.load %arg9[%c0_80, %c0_81, %c0_82, %c0_83] : memref<1x1x8x1xf32, #tpu.memory_space<vmem>>, vector<1x1x8x1xf32>
    %77 = vector.shape_cast %76 : vector<1x1x8x1xf32> to vector<8x1xf32>
    %78 = vector.shape_cast %75 : vector<8x1xf32> to vector<1x1x8x1xf32>
    tpu.vector_store %arg9[%c0_80, %c0_81, %c0_82, %c0_83], %78 {strides = array<i32>} : memref<1x1x8x1xf32, #tpu.memory_space<vmem>>, vector<1x1x8x1xf32>,
    return
  }
  func.func @transform_0(%arg0: i32, %arg1: i32) -> (i32, i32, i32) {
    %c0_i32 = arith.constant 0 : i32
    %c0_i32_0 = arith.constant 0 : i32
    return %arg0, %c0_i32, %arg1 : i32, i32, i32
  }
  func.func @transform_1(%arg0: i32, %arg1: i32) -> (i32, i32, i32) {
    %c1_i32 = arith.constant 1 : i32
    %0 = arith.addi %arg1, %c1_i32 : i32
    %c0_i32 = arith.constant 0 : i32
    %c0_i32_0 = arith.constant 0 : i32
    return %arg0, %c0_i32, %0 : i32, i32, i32
  }
  func.func @transform_2(%arg0: i32, %arg1: i32) -> (i32, i32) {
    %c0_i32 = arith.constant 0 : i32
    %c0_i32_0 = arith.constant 0 : i32
    %c0_i32_1 = arith.constant 0 : i32
    return %c0_i32, %c0_i32_0 : i32, i32
  }
  func.func @transform_3(%arg0: i32, %arg1: i32) -> (i32, i32) {
    %c0_i32 = arith.constant 0 : i32
    %c0_i32_0 = arith.constant 0 : i32
    %c0_i32_1 = arith.constant 0 : i32
    return %c0_i32, %c0_i32_0 : i32, i32
  }
  func.func @transform_4(%arg0: i32, %arg1: i32) -> (i32, i32) {
    %c0_i32 = arith.constant 0 : i32
    %c0_i32_0 = arith.constant 0 : i32
    return %c0_i32, %arg1 : i32, i32
  }
  func.func @transform_5(%arg0: i32, %arg1: i32) -> (i32, i32, i32) {
    %c0_i32 = arith.constant 0 : i32
    %c0_i32_0 = arith.constant 0 : i32
    return %arg0, %c0_i32, %arg1 : i32, i32, i32
  }
  func.func @transform_6(%arg0: i32, %arg1: i32) -> (i32, i32, i32, i32) {
    %c0_i32 = arith.constant 0 : i32
    %c0_i32_0 = arith.constant 0 : i32
    %c0_i32_1 = arith.constant 0 : i32
    return %arg0, %arg1, %c0_i32, %c0_i32_0 : i32, i32, i32, i32
  }
  func.func @transform_7(%arg0: i32, %arg1: i32) -> (i32, i32, i32, i32) {
    %c0_i32 = arith.constant 0 : i32
    %c0_i32_0 = arith.constant 0 : i32
    %c0_i32_1 = arith.constant 0 : i32
    return %arg0, %arg1, %c0_i32, %c0_i32_0 : i32, i32, i32, i32
  }
}

</mosaic_0001>

<llo_original>
// kernel: cnn2d_block.2
$region0: #{cnn2d_block.2}
  #allocation0 [shape = 'u32[]', space=smem, size = 0x4, offset = 0x4, fixed_abs, tag = 'smem constant byte address 0x4 - core index']
  #allocation1 [shape = 'u32[72,128]{1,0:T(1,128)}', space=vmem, size = 0x9000, scoped, tag = 'internal scratch']
  #allocation2 [shape = 'f32[36,384]{1,0:T(8,128)}', space=vmem, size = 0xf000, scoped, tag = 'scratch operand']
  %s0 = inlined_call_operand.vmem [shape: f32[2,4,768], index: 0, kind: input, shape index: {}, may-alias: {0,1}]
  %s1 = inlined_call_operand.vmem [shape: f32[2,4,768], index: 1, kind: input, shape index: {}, may-alias: {0,1}]
  %s2 = inlined_call_operand.vmem [shape: f32[8,36], index: 2, kind: input, shape index: {}]
  %s3 = inlined_call_operand.vmem [shape: f32[8,1], index: 3, kind: input, shape index: {}]
  %s4 = inlined_call_operand.vmem [shape: f32[1,384], index: 4, kind: input, shape index: {}]
  %s5 = inlined_call_operand.vmem [shape: f32[2,8,384], index: 5, kind: output, shape index: {0}]
  %s6 = inlined_call_operand.vmem [shape: f32[2,1,8,1], index: 6, kind: output, shape index: {1}]
  %s7 = inlined_call_operand.vmem [shape: f32[2,1,8,1], index: 7, kind: output, shape index: {2}]
  %8 = xla_tuple %s5, %s6, %s7
  %s9 = sld [smem:[#allocation0]]
  $region69: #{cnn2d_block.2} parent=0
    _
  %s11 = ssub.s32 1, %s9
  %s12 = scalar_select 0, %s11, %s9
  loop: start=0, step=1, limit=4
  $region2: #{cnn2d_block.2} parent=0 // loop_pre_header
    _
  $region3: #{cnn2d_block.2} parent=0 // loop_header
    %s14 = sphi 0, %s18
    %p15 = scmp.ge.s32.totalorder %s14, 4
    %s21 = sphi 0, %s33
    %s22 = sphi 0, %s29
    %s23 = sphi 0, %s21
    %s24 = sphi 0, %s22
    %s25 = sphi 0, %s23
    %s26 = sphi 0, %s24
    %s38 = sphi 0, %s40
    %s41 = sphi 0, %s38
    %s42 = sphi 0, %s41
    %s58 = sphi 0, %s42
    %s68 = sphi 0, %s70
    %s71 = sphi 0, %s68
    %s72 = sphi 0, %s71
    %s88 = sphi 0, %s72
    %s92 = sphi 0, %s92
    %s94 = sphi 0, %s92
    %s95 = sphi 0, %s94
    %s109 = sphi 0, %s95
    %s113 = sphi 0, %s113
    %s115 = sphi 0, %s113
    %s116 = sphi 0, %s115
    %s130 = sphi 0, %s116
    %s136 = sphi 0, %s138
    %s139 = sphi 0, %s136
    %s140 = sphi 0, %s139
    %s156 = sphi 0, %s140
    %s164 = sphi 0, %s166
    %s167 = sphi 0, %s164
    %s168 = sphi 0, %s167
    %s184 = sphi 0, %s168
    %s192 = sphi 0, %s194
    %s195 = sphi 0, %s192
    %s196 = sphi 0, %s195
    %s212 = sphi 0, %s196
    %s220 = sphi 0, %s222
    %s223 = sphi 0, %s220
    %s224 = sphi 0, %s223
    %s240 = sphi 0, %s224
  $region4: #{cnn2d_block.2} parent=0 // loop_header_branch
    %17 = sbr.rel (%p15) target = $region8
  $region5: #{cnn2d_block.2} parent=0 // loop_body
    %s19 = ssub.s32 %s14, 1
    %s20 = ssub.s32 %s14, 2
    %s27 = sadd.s32 1, %s22
    %p28 = scmp.ge.s32.totalorder %s27, 1
    %s29 = scalar_select %p28, 0, %s27
    %s30 = sadd.s32 1, %s21
    %s31 = scalar_select %p28, %s30, %s21
    %p32 = scmp.ge.s32.totalorder %s31, 2
    %s33 = scalar_select %p32, 0, %s31
    %s34 = ssub.s32 %s21, %s33
    %s35 = ssub.s32 %s22, %s29
    %s36 = sor.u32 %s34, %s35
    %p37 = scmp.eq.s32.totalorder %s36, 0
    %s39 = sadd.s32 %s38, 1
    %s40 = scalar_select %p37, %s38, %s39
    %p43 = pneg %p37
    %p44 = scmp.eq.s32.totalorder %s14, 1
    %p45 = por %p43, %p44
    %p46 = scmp.ne.s32.totalorder %s38, %s41
    %p47 = scmp.eq.s32.totalorder %s14, 0
    %p48 = por %p46, %p47
    %p49 = scmp.ne.s32.totalorder %s38, %s41
    %p50 = scmp.eq.s32.totalorder %s19, 1
    %p51 = por %p49, %p50
    %p52 = scmp.ne.s32.totalorder %s41, %s42
    %p53 = scmp.eq.s32.totalorder %s19, 0
    %p54 = por %p52, %p53
    %p55 = scmp.ne.s32.totalorder %s41, %s42
    %p56 = scmp.eq.s32.totalorder %s20, 1
    %p57 = por %p55, %p56
    %p59 = scmp.ne.s32.totalorder %s42, %s58
    %p60 = scmp.eq.s32.totalorder %s20, 0
    %p61 = por %p59, %p60
    %s62 = sadd.s32 %s22, 1
    %s63 = sadd.s32 %s29, 1
    %s64 = ssub.s32 %s21, %s33
    %s65 = ssub.s32 %s62, %s63
    %s66 = sor.u32 %s64, %s65
    %p67 = scmp.eq.s32.totalorder %s66, 0
    %s69 = sadd.s32 %s68, 1
    %s70 = scalar_select %p67, %s68, %s69
    %p73 = pneg %p67
    %p74 = scmp.eq.s32.totalorder %s14, 1
    %p75 = por %p73, %p74
    %p76 = scmp.ne.s32.totalorder %s68, %s71
    %p77 = scmp.eq.s32.totalorder %s14, 0
    %p78 = por %p76, %p77
    %p79 = scmp.ne.s32.totalorder %s68, %s71
    %p80 = scmp.eq.s32.totalorder %s19, 1
    %p81 = por %p79, %p80
    %p82 = scmp.ne.s32.totalorder %s71, %s72
    %p83 = scmp.eq.s32.totalorder %s19, 0
    %p84 = por %p82, %p83
    %p85 = scmp.ne.s32.totalorder %s71, %s72
    %p86 = scmp.eq.s32.totalorder %s20, 1
    %p87 = por %p85, %p86
    %p89 = scmp.ne.s32.totalorder %s72, %s88
    %p90 = scmp.eq.s32.totalorder %s20, 0
    %p91 = por %p89, %p90
    %s93 = sadd.s32 %s92, 1
    %p96 = scmp.eq.s32.totalorder %s14, 1
    %p97 = scmp.ne.s32.totalorder %s92, %s94
    %p98 = scmp.eq.s32.totalorder %s14, 0
    %p99 = por %p97, %p98
    %p100 = scmp.ne.s32.totalorder %s92, %s94
    %p101 = scmp.eq.s32.totalorder %s19, 1
    %p102 = por %p100, %p101
    %p103 = scmp.ne.s32.totalorder %s94, %s95
    %p104 = scmp.eq.s32.totalorder %s19, 0
    %p105 = por %p103, %p104
    %p106 = scmp.ne.s32.totalorder %s94, %s95
    %p107 = scmp.eq.s32.totalorder %s20, 1
    %p108 = por %p106, %p107
    %p110 = scmp.ne.s32.totalorder %s95, %s109
    %p111 = scmp.eq.s32.totalorder %s20, 0
    %p112 = por %p110, %p111
    %s114 = sadd.s32 %s113, 1
    %p117 = scmp.eq.s32.totalorder %s14, 1
    %p118 = scmp.ne.s32.totalorder %s113, %s115
    %p119 = scmp.eq.s32.totalorder %s14, 0
    %p120 = por %p118, %p119
    %p121 = scmp.ne.s32.totalorder %s113, %s115
    %p122 = scmp.eq.s32.totalorder %s19, 1
    %p123 = por %p121, %p122
    %p124 = scmp.ne.s32.totalorder %s115, %s116
    %p125 = scmp.eq.s32.totalorder %s19, 0
    %p126 = por %p124, %p125
    %p127 = scmp.ne.s32.totalorder %s115, %s116
    %p128 = scmp.eq.s32.totalorder %s20, 1
    %p129 = por %p127, %p128
    %p131 = scmp.ne.s32.totalorder %s116, %s130
    %p132 = scmp.eq.s32.totalorder %s20, 0
    %p133 = por %p131, %p132
    %s134 = ssub.s32 %s22, %s29
    %p135 = scmp.eq.s32.totalorder %s134, 0
    %s137 = sadd.s32 %s136, 1
    %s138 = scalar_select %p135, %s136, %s137
    %p141 = pneg %p135
    %p142 = scmp.eq.s32.totalorder %s14, 1
    %p143 = por %p141, %p142
    %p144 = scmp.ne.s32.totalorder %s136, %s139
    %p145 = scmp.eq.s32.totalorder %s14, 0
    %p146 = por %p144, %p145
    %p147 = scmp.ne.s32.totalorder %s136, %s139
    %p148 = scmp.eq.s32.totalorder %s19, 1
    %p149 = por %p147, %p148
    %p150 = scmp.ne.s32.totalorder %s139, %s140
    %p151 = scmp.eq.s32.totalorder %s19, 0
    %p152 = por %p150, %p151
    %p153 = scmp.ne.s32.totalorder %s139, %s140
    %p154 = scmp.eq.s32.totalorder %s20, 1
    %p155 = por %p153, %p154
    %p157 = scmp.ne.s32.totalorder %s140, %s156
    %p158 = scmp.eq.s32.totalorder %s20, 0
    %p159 = por %p157, %p158
    %s160 = ssub.s32 %s21, %s33
    %s161 = ssub.s32 %s22, %s29
    %s162 = sor.u32 %s160, %s161
    %p163 = scmp.eq.s32.totalorder %s162, 0
    %s165 = sadd.s32 %s164, 1
    %s166 = scalar_select %p163, %s164, %s165
    %p169 = pneg %p163
    %p170 = scmp.eq.s32.totalorder %s14, 1
    %p171 = por %p169, %p170
    %p172 = scmp.ne.s32.totalorder %s164, %s167
    %p173 = scmp.eq.s32.totalorder %s14, 0
    %p174 = por %p172, %p173
    %p175 = scmp.ne.s32.totalorder %s164, %s167
    %p176 = scmp.eq.s32.totalorder %s19, 1
    %p177 = por %p175, %p176
    %p178 = scmp.ne.s32.totalorder %s167, %s168
    %p179 = scmp.eq.s32.totalorder %s19, 0
    %p180 = por %p178, %p179
    %p181 = scmp.ne.s32.totalorder %s167, %s168
    %p182 = scmp.eq.s32.totalorder %s20, 1
    %p183 = por %p181, %p182
    %p185 = scmp.ne.s32.totalorder %s168, %s184
    %p186 = scmp.eq.s32.totalorder %s20, 0
    %p187 = por %p185, %p186
    %s188 = ssub.s32 %s21, %s33
    %s189 = ssub.s32 %s22, %s29
    %s190 = sor.u32 %s188, %s189
    %p191 = scmp.eq.s32.totalorder %s190, 0
    %s193 = sadd.s32 %s192, 1
    %s194 = scalar_select %p191, %s192, %s193
    %p197 = pneg %p191
    %p198 = scmp.eq.s32.totalorder %s14, 1
    %p199 = por %p197, %p198
    %p200 = scmp.ne.s32.totalorder %s192, %s195
    %p201 = scmp.eq.s32.totalorder %s14, 0
    %p202 = por %p200, %p201
    %p203 = scmp.ne.s32.totalorder %s192, %s195
    %p204 = scmp.eq.s32.totalorder %s19, 1
    %p205 = por %p203, %p204
    %p206 = scmp.ne.s32.totalorder %s195, %s196
    %p207 = scmp.eq.s32.totalorder %s19, 0
    %p208 = por %p206, %p207
    %p209 = scmp.ne.s32.totalorder %s195, %s196
    %p210 = scmp.eq.s32.totalorder %s20, 1
    %p211 = por %p209, %p210
    %p213 = scmp.ne.s32.totalorder %s196, %s212
    %p214 = scmp.eq.s32.totalorder %s20, 0
    %p215 = por %p213, %p214
    %s216 = ssub.s32 %s21, %s33
    %s217 = ssub.s32 %s22, %s29
    %s218 = sor.u32 %s216, %s217
    %p219 = scmp.eq.s32.totalorder %s218, 0
    %s221 = sadd.s32 %s220, 1
    %s222 = scalar_select %p219, %s220, %s221
    %p225 = pneg %p219
    %p226 = scmp.eq.s32.totalorder %s14, 1
    %p227 = por %p225, %p226
    %p228 = scmp.ne.s32.totalorder %s220, %s223
    %p229 = scmp.eq.s32.totalorder %s14, 0
    %p230 = por %p228, %p229
    %p231 = scmp.ne.s32.totalorder %s220, %s223
    %p232 = scmp.eq.s32.totalorder %s19, 1
    %p233 = por %p231, %p232
    %p234 = scmp.ne.s32.totalorder %s223, %s224
    %p235 = scmp.eq.s32.totalorder %s19, 0
    %p236 = por %p234, %p235
    %p237 = scmp.ne.s32.totalorder %s223, %s224
    %p238 = scmp.eq.s32.totalorder %s20, 1
    %p239 = por %p237, %p238
    %p241 = scmp.ne.s32.totalorder %s224, %s240
    %p242 = scmp.eq.s32.totalorder %s20, 0
    %p243 = por %p241, %p242
    %p244 = scmp.le.s32.totalorder 1, %s14
    %p245 = scmp.lt.s32.totalorder %s14, 3
    %p246 = pnand %p244, %p245
    %p247 = pneg %p246
    // Predicated region
    $region9: #{cnn2d_block.2} parent=5 // pred_check
      _
    $region10: #{cnn2d_block.2} parent=5 // pred_check_branch
      %249 = sbr.rel (%p246) target = $region12
    $region11: #{cnn2d_block.2} parent=5 // pred_region
      %s250 = ssub.s32 %s14, 1
      // Predicated region
      $region13: #{cnn2d_block.2} parent=11 // pred_check
        %p251 = pneg %p105
      $region14: #{cnn2d_block.2} parent=11 // pred_check_branch
        %253 = sbr.rel (%p251) target = $region16
      $region15: #{cnn2d_block.2} parent=11 // pred_region
        _
      $region16: #{cnn2d_block.2} parent=11 // pred_fallthru
        _
      // Predicated region
      $region17: #{cnn2d_block.2} parent=11 // pred_check
        %p254 = pneg %p126
      $region18: #{cnn2d_block.2} parent=11 // pred_check_branch
        %256 = sbr.rel (%p254) target = $region20
      $region19: #{cnn2d_block.2} parent=11 // pred_region
        _
      $region20: #{cnn2d_block.2} parent=11 // pred_fallthru
        _
      // Predicated region
      $region21: #{cnn2d_block.2} parent=11 // pred_check
        %p257 = pneg %p152
      $region22: #{cnn2d_block.2} parent=11 // pred_check_branch
        %259 = sbr.rel (%p257) target = $region24
      $region23: #{cnn2d_block.2} parent=11 // pred_region
        %s260 = smul.u32 3, %s24
        %p261 = scmp.lt.s32.totalorder %s260, 2
        %s262 = scalar_select %p261, %s260, 2
        %s263 = scalar_lea.vmem %s4, %s262
        %s264 = smul.u32 3, %s24
      $region24: #{cnn2d_block.2} parent=11 // pred_fallthru
        _
    $region12: #{cnn2d_block.2} parent=5 // pred_fallthru
      _
    %p265 = scmp.lt.s32.totalorder %s14, 2
    // Predicated region
    $region25: #{cnn2d_block.2} parent=5 // pred_check
      %p266 = pneg %p265
    $region26: #{cnn2d_block.2} parent=5 // pred_check_branch
      %268 = sbr.rel (%p266) target = $region28
    $region27: #{cnn2d_block.2} parent=5 // pred_region
      // Predicated region
      $region29: #{cnn2d_block.2} parent=27 // pred_check
        %p269 = pneg %p48
      $region30: #{cnn2d_block.2} parent=27 // pred_check_branch
        %271 = sbr.rel (%p269) target = $region32
      $region31: #{cnn2d_block.2} parent=27 // pred_region
        %s272 = smul.u32 3, %s22
        %p273 = scmp.lt.s32.totalorder %s21, 1
        %s274 = scalar_select %p273, %s21, 1
        %p275 = scmp.lt.s32.totalorder %s272, 5
        %s276 = scalar_select %p275, %s272, 5
        %s277 = smul.addr %s274, 6
        %s278 = sadd.s32 %s276, %s277
        %s279 = smul.addr %s278, 4
        %s280 = scalar_lea.vmem %s0, %s279
        %s281 = smul.u32 3, %s22
      $region32: #{cnn2d_block.2} parent=27 // pred_fallthru
        _
      // Predicated region
      $region33: #{cnn2d_block.2} parent=27 // pred_check
        %p282 = pneg %p78
      $region34: #{cnn2d_block.2} parent=27 // pred_check_branch
        %284 = sbr.rel (%p282) target = $region36
      $region35: #{cnn2d_block.2} parent=27 // pred_region
        %s285 = sadd.s32 %s22, 1
        %s286 = smul.u32 3, %s285
        %p287 = scmp.lt.s32.totalorder %s21, 1
        %s288 = scalar_select %p287, %s21, 1
        %p289 = scmp.lt.s32.totalorder %s286, 5
        %s290 = scalar_select %p289, %s286, 5
        %s291 = smul.addr %s288, 6
        %s292 = sadd.s32 %s290, %s291
        %s293 = smul.addr %s292, 4
        %s294 = scalar_lea.vmem %s1, %s293
        %s295 = sadd.s32 %s22, 1
        %s296 = smul.u32 3, %s295
      $region36: #{cnn2d_block.2} parent=27 // pred_fallthru
        _
    $region28: #{cnn2d_block.2} parent=5 // pred_fallthru
      _
    %p297 = scmp.le.s32.totalorder 1, %s14
    %p298 = scmp.lt.s32.totalorder %s14, 3
    %p299 = pnand %p297, %p298
    %p300 = pneg %p299
    // Predicated region
    $region37: #{cnn2d_block.2} parent=5 // pred_check
      _
    $region38: #{cnn2d_block.2} parent=5 // pred_check_branch
      %302 = sbr.rel (%p299) target = $region40
    $region39: #{cnn2d_block.2} parent=5 // pred_region
      %s303 = ssub.s32 %s14, 1
      %s304 = smul.u32 3, %s24
      %p305 = scmp.lt.s32.totalorder %s23, 1
      %s306 = scalar_select %p305, %s23, 1
      %p307 = scmp.lt.s32.totalorder %s304, 5
      %s308 = scalar_select %p307, %s304, 5
      %s309 = smul.addr %s306, 6
      %s310 = sadd.s32 %s308, %s309
      %s311 = smul.addr %s310, 4
      %s312 = scalar_lea.vmem %s0, %s311
      %p313 = pneg %p54
      %p314 = pneg %p51
      %s315 = sadd.s32 %s24, 1
      %s316 = smul.u32 3, %s315
      %p317 = scmp.lt.s32.totalorder %s23, 1
      %s318 = scalar_select %p317, %s23, 1
      %p319 = scmp.lt.s32.totalorder %s316, 5
      %s320 = scalar_select %p319, %s316, 5
      %s321 = smul.addr %s318, 6
      %s322 = sadd.s32 %s320, %s321
      %s323 = smul.addr %s322, 4
      %s324 = scalar_lea.vmem %s1, %s323
      %p325 = pneg %p84
      %p326 = pneg %p81
      %p327 = pneg %p105
      %p328 = pneg %p102
      %p329 = pneg %p126
      %p330 = pneg %p123
      %s331 = smul.u32 3, %s24
      %p332 = scmp.lt.s32.totalorder %s331, 2
      %s333 = scalar_select %p332, %s331, 2
      %s334 = scalar_lea.vmem %s4, %s333
      %p335 = pneg %p152
      %p336 = pneg %p149
      %p337 = pneg %p180
      %p338 = pneg %p177
      %s339 = smul.u32 3, %s24
      %p340 = scmp.lt.s32.totalorder %s23, 1
      %s341 = scalar_select %p340, %s23, 1
      %p342 = scmp.lt.s32.totalorder %s339, 2
      %s343 = scalar_select %p342, %s339, 2
      %s344 = smul.addr %s341, 3
      %s345 = sadd.s32 %s343, %s344
      %s346 = smul.addr %s345, 8
      %s347 = scalar_lea.vmem %s5, %s346
      %p348 = pneg %p208
      %p349 = pneg %p205
      %p350 = scmp.lt.s32.totalorder %s23, 1
      %s351 = scalar_select %p350, %s23, 1
      %p352 = scmp.lt.s32.totalorder %s24, 0
      %s353 = scalar_select %p352, %s24, 0
      %s354 = sadd.s32 %s353, %s351
      %s355 = smul.addr %s354, 8
      %s356 = scalar_lea.vmem %s6, %s355
      %p357 = pneg %p236
      %p358 = pneg %p233
      %p359 = scmp.lt.s32.totalorder %s23, 1
      %s360 = scalar_select %p359, %s23, 1
      %p361 = scmp.lt.s32.totalorder %s24, 0
      %s362 = scalar_select %p361, %s24, 0
      %s363 = sadd.s32 %s362, %s360
      %s364 = smul.addr %s363, 8
      %s365 = scalar_lea.vmem %s7, %s364
      %s366 = smul.u32 3, %s24
      %p367 = scmp.lt.s32.totalorder %s23, 1
      %s368 = scalar_select %p367, %s23, 1
      %p369 = scmp.lt.s32.totalorder %s366, 5
      %s370 = scalar_select %p369, %s366, 5
      %s371 = smul.addr %s368, 6
      %s372 = sadd.s32 %s370, %s371
      %s373 = smul.addr %s372, 4
      %s374 = scalar_lea.vmem %s0, %s373
      %s375 = smul.u32 3, %s24
      %s376 = sadd.s32 %s24, 1
      %s377 = smul.u32 3, %s376
      %p378 = scmp.lt.s32.totalorder %s23, 1
      %s379 = scalar_select %p378, %s23, 1
      %p380 = scmp.lt.s32.totalorder %s377, 5
      %s381 = scalar_select %p380, %s377, 5
      %s382 = smul.addr %s379, 6
      %s383 = sadd.s32 %s381, %s382
      %s384 = smul.addr %s383, 4
      %s385 = scalar_lea.vmem %s1, %s384
      %s386 = sadd.s32 %s24, 1
      %s387 = smul.u32 3, %s386
      %s388 = smul.u32 3, %s24
      %p389 = scmp.lt.s32.totalorder %s388, 2
      %s390 = scalar_select %p389, %s388, 2
      %s391 = scalar_lea.vmem %s4, %s390
      %s392 = smul.u32 3, %s24
      %s393 = smul.u32 3, %s24
      %p394 = scmp.lt.s32.totalorder %s23, 1
      %s395 = scalar_select %p394, %s23, 1
      %p396 = scmp.lt.s32.totalorder %s393, 2
      %s397 = scalar_select %p396, %s393, 2
      %s398 = smul.addr %s395, 3
      %s399 = sadd.s32 %s397, %s398
      %s400 = smul.addr %s399, 8
      %s401 = scalar_lea.vmem %s5, %s400
      %s402 = smul.u32 3, %s24
      %p403 = scmp.lt.s32.totalorder %s23, 1
      %s404 = scalar_select %p403, %s23, 1
      %p405 = scmp.lt.s32.totalorder %s24, 0
      %s406 = scalar_select %p405, %s24, 0
      %s407 = sadd.s32 %s406, %s404
      %s408 = smul.addr %s407, 8
      %s409 = scalar_lea.vmem %s6, %s408
      %p410 = scmp.lt.s32.totalorder %s23, 1
      %s411 = scalar_select %p410, %s23, 1
      %p412 = scmp.lt.s32.totalorder %s24, 0
      %s413 = scalar_select %p412, %s24, 0
      %s414 = sadd.s32 %s413, %s411
      %s415 = smul.addr %s414, 8
      %s416 = scalar_lea.vmem %s7, %s415
      %v417 = vld [vmem:[%s374] sm:$0xff]
      %v418 = vld [vmem:[%s374 + $0x8] sm:$0xf]
      %421 = vst [vmem:[#allocation1] ss:$2 sm:$0xff] %v417
      %s422 = scalar_lea.vmem [#allocation1], 16
      %423 = vst [vmem:[%s422] ss:$2 sm:$0xff] %v418
      %v424 = vld.sshfl [vmem:[#allocation1] sm:$0xff pattern:$0x75316420]
      %v425 = vld.sshfl [vmem:[#allocation1 + $0x8] sm:$0xff pattern:$0x75316420]
      %v426 = vld.sshfl [vmem:[#allocation1 + $0x10] sm:$0xff pattern:$0x75316420]
      %430 = vst [vmem:[#allocation2] sm:$0xf] %v424
      %431 = vst [vmem:[#allocation2 + $0x8] sm:$0xf] %v425
      %432 = vst [vmem:[#allocation2 + $0x10] sm:$0xf] %v426
      %v433 = vld [vmem:[%s374] sm:$0xff]
      %v434 = vld [vmem:[%s374 + $0x8] sm:$0xf]
      %s437 = scalar_lea.vmem [#allocation1], 1
      %438 = vst [vmem:[%s437] ss:$2 sm:$0xff] %v433
      %s439 = scalar_lea.vmem [#allocation1], 17
      %440 = vst [vmem:[%s439] ss:$2 sm:$0xff] %v434
      %v441 = vld.sshfl [vmem:[#allocation1] sm:$0xff pattern:$0x75316420]
      %v442 = vld.sshfl [vmem:[#allocation1 + $0x8] sm:$0xff pattern:$0x75316420]
      %v443 = vld.sshfl [vmem:[#allocation1 + $0x10] sm:$0xff pattern:$0x75316420]
      %444 = vrot.lane.b32.xlu0 %v441, 127
      %v445 = vpop.permute.xlu0 %444
      %446 = vrot.lane.b32.xlu0 %v442, 127
      %v447 = vpop.permute.xlu0 %446
      %448 = vrot.lane.b32.xlu0 %v443, 127
      %v449 = vpop.permute.xlu0 %448
      %vm450 = vcmask 1039360
      %v451 = vsel %vm450, %v445, %v447
      %v452 = vsel %vm450, %v447, %v449
      %456 = vst [vmem:[#allocation2] sm:$0xf0] %v451
      %457 = vst [vmem:[#allocation2 + $0x8] sm:$0xf0] %v452
      %vm458 = vcmask 1039364
      %459 = vst.msk [vmem:[#allocation2 + $0x10] sm:$0xf0] %vm458, %v449
      %v460 = vld [vmem:[%s385] sm:$0xf]
      %s462 = scalar_lea.vmem [#allocation1], 1
      %463 = vst [vmem:[%s462] ss:$2 sm:$0xff] %v460
      %v464 = vld.sshfl [vmem:[#allocation1] sm:$0xff pattern:$0x75316420]
      %465 = vrot.lane.b32.xlu0 %v464, 127
      %v466 = vpop.permute.xlu0 %465
      %vm468 = vcmask 1048572
      %469 = vst.msk [vmem:[#allocation2 + $0x10] sm:$0xf0] %vm468, %v466
      %v470 = vld [vmem:[%s374] sm:$0xff]
      %v471 = vld [vmem:[%s374 + $0x8] sm:$0xf]
      %474 = vst [vmem:[#allocation1] ss:$2 sm:$0xff] %v470
      %s475 = scalar_lea.vmem [#allocation1], 16
      %476 = vst [vmem:[%s475] ss:$2 sm:$0xff] %v471
      %v477 = vld.sshfl [vmem:[#allocation1] sm:$0xff pattern:$0x75316420]
      %v478 = vld.sshfl [vmem:[#allocation1 + $0x8] sm:$0xff pattern:$0x75316420]
      %v479 = vld.sshfl [vmem:[#allocation1 + $0x10] sm:$0xff pattern:$0x75316420]
      %480 = vrot.lane.b32.xlu0 %v477, 126
      %v481 = vpop.permute.xlu0 %480
      %482 = vrot.lane.b32.xlu0 %v478, 126
      %v483 = vpop.permute.xlu0 %482
      %484 = vrot.lane.b32.xlu0 %v479, 126
      %v485 = vpop.permute.xlu0 %484
      %vm486 = vcmask 1031168
      %v487 = vsel %vm486, %v481, %v483
      %v488 = vsel %vm486, %v483, %v485
      %492 = vst [vmem:[#allocation2 + $0x18] sm:$0xf] %v487
      %493 = vst [vmem:[#allocation2 + $0x20] sm:$0xf] %v488
      %vm494 = vcmask 1027072
      %495 = vst.msk [vmem:[#allocation2 + $0x28] sm:$0xf] %vm494, %v485
      %v496 = vld [vmem:[%s385] sm:$0xf]
      %498 = vst [vmem:[#allocation1] ss:$2 sm:$0xff] %v496
      %v499 = vld.sshfl [vmem:[#allocation1] sm:$0xff pattern:$0x75316420]
      %500 = vrot.lane.b32.xlu0 %v499, 126
      %v501 = vpop.permute.xlu0 %500
      %vm503 = vcmask 1044464
      %504 = vst.msk [vmem:[#allocation2 + $0x28] sm:$0xf] %vm503, %v501
      %v505 = vld [vmem:[%s374] sm:$0xff]
      %v506 = vld [vmem:[%s374 + $0x8] sm:$0xf]
      %s509 = scalar_lea.vmem [#allocation1], 1
      %510 = vst [vmem:[%s509] ss:$2 sm:$0xff] %v505
      %s511 = scalar_lea.vmem [#allocation1], 17
      %512 = vst [vmem:[%s511] ss:$2 sm:$0xff] %v506
      %v513 = vld.sshfl [vmem:[#allocation1] sm:$0xff pattern:$0x75316420]
      %v514 = vld.sshfl [vmem:[#allocation1 + $0x8] sm:$0xff pattern:$0x75316420]
      %v515 = vld.sshfl [vmem:[#allocation1 + $0x10] sm:$0xff pattern:$0x75316420]
      %516 = vrot.lane.b32.xlu0 %v513, 108
      %v517 = vpop.permute.xlu0 %516
      %518 = vrot.lane.b32.xlu0 %v514, 108
      %v519 = vpop.permute.xlu0 %518
      %520 = vrot.lane.b32.xlu0 %v515, 108
      %v521 = vpop.permute.xlu0 %520
      %vm522 = vcmask 883712
      %v523 = vsel %vm522, %v517, %v519
      %v524 = vsel %vm522, %v519, %v521
      %528 = vst [vmem:[#allocation2 + $0x18] sm:$0xf0] %v523
      %529 = vst [vmem:[#allocation2 + $0x20] sm:$0xf0] %v524
      %vm530 = vcmask 883716
      %531 = vst.msk [vmem:[#allocation2 + $0x28] sm:$0xf0] %vm530, %v521
      %v532 = vld [vmem:[%s385] sm:$0xf]
      %s534 = scalar_lea.vmem [#allocation1], 1
      %535 = vst [vmem:[%s534] ss:$2 sm:$0xff] %v532
      %v536 = vld.sshfl [vmem:[#allocation1] sm:$0xff pattern:$0x75316420]
      %537 = vrot.lane.b32.xlu0 %v536, 108
      %v538 = vpop.permute.xlu0 %537
      %vm540 = vcmask 1048420
      %541 = vst.msk [vmem:[#allocation2 + $0x28] sm:$0xf0] %vm540, %v538
      %v542 = vld [vmem:[%s374] sm:$0xff]
      %v543 = vld [vmem:[%s374 + $0x8] sm:$0xf]
      %546 = vst [vmem:[#allocation1] ss:$2 sm:$0xff] %v542
      %s547 = scalar_lea.vmem [#allocation1], 16
      %548 = vst [vmem:[%s547] ss:$2 sm:$0xff] %v543
      %v549 = vld.sshfl [vmem:[#allocation1] sm:$0xff pattern:$0x75316420]
      %v550 = vld.sshfl [vmem:[#allocation1 + $0x8] sm:$0xff pattern:$0x75316420]
      %v551 = vld.sshfl [vmem:[#allocation1 + $0x10] sm:$0xff pattern:$0x75316420]
      %552 = vrot.lane.b32.xlu0 %v549, 107
      %v553 = vpop.permute.xlu0 %552
      %554 = vrot.lane.b32.xlu0 %v550, 107
      %v555 = vpop.permute.xlu0 %554
      %556 = vrot.lane.b32.xlu0 %v551, 107
      %v557 = vpop.permute.xlu0 %556
      %vm558 = vcmask 875520
      %v559 = vsel %vm558, %v553, %v555
      %v560 = vsel %vm558, %v555, %v557
      %564 = vst [vmem:[#allocation2 + $0x30] sm:$0xf] %v559
      %565 = vst [vmem:[#allocation2 + $0x38] sm:$0xf] %v560
      %vm566 = vcmask 871424
      %567 = vst.msk [vmem:[#allocation2 + $0x40] sm:$0xf] %vm566, %v557
      %v568 = vld [vmem:[%s385] sm:$0xf]
      %570 = vst [vmem:[#allocation1] ss:$2 sm:$0xff] %v568
      %v571 = vld.sshfl [vmem:[#allocation1] sm:$0xff pattern:$0x75316420]
      %572 = vrot.lane.b32.xlu0 %v571, 107
      %v573 = vpop.permute.xlu0 %572
      %vm575 = vcmask 1044312
      %576 = vst.msk [vmem:[#allocation2 + $0x40] sm:$0xf] %vm575, %v573
      %v577 = vld [vmem:[%s374] sm:$0xff]
      %v578 = vld [vmem:[%s374 + $0x8] sm:$0xf]
      %s581 = scalar_lea.vmem [#allocation1], 1
      %582 = vst [vmem:[%s581] ss:$2 sm:$0xff] %v577
      %s583 = scalar_lea.vmem [#allocation1], 17
      %584 = vst [vmem:[%s583] ss:$2 sm:$0xff] %v578
      %v585 = vld.sshfl [vmem:[#allocation1] sm:$0xff pattern:$0x75316420]
      %v586 = vld.sshfl [vmem:[#allocation1 + $0x8] sm:$0xff pattern:$0x75316420]
      %v587 = vld.sshfl [vmem:[#allocation1 + $0x10] sm:$0xff pattern:$0x75316420]
      %588 = vrot.lane.b32.xlu0 %v585, 106
      %v589 = vpop.permute.xlu0 %588
      %590 = vrot.lane.b32.xlu0 %v586, 106
      %v591 = vpop.permute.xlu0 %590
      %592 = vrot.lane.b32.xlu0 %v587, 106
      %v593 = vpop.permute.xlu0 %592
      %vm594 = vcmask 867328
      %v595 = vsel %vm594, %v589, %v591
      %v596 = vsel %vm594, %v591, %v593
      %600 = vst [vmem:[#allocation2 + $0x30] sm:$0xf0] %v595
      %601 = vst [vmem:[#allocation2 + $0x38] sm:$0xf0] %v596
      %vm602 = vcmask 867332
      %603 = vst.msk [vmem:[#allocation2 + $0x40] sm:$0xf0] %vm602, %v593
      %v604 = vld [vmem:[%s385] sm:$0xf]
      %s606 = scalar_lea.vmem [#allocation1], 1
      %607 = vst [vmem:[%s606] ss:$2 sm:$0xff] %v604
      %v608 = vld.sshfl [vmem:[#allocation1] sm:$0xff pattern:$0x75316420]
      %609 = vrot.lane.b32.xlu0 %v608, 106
      %v610 = vpop.permute.xlu0 %609
      %vm612 = vcmask 1048404
      %613 = vst.msk [vmem:[#allocation2 + $0x40] sm:$0xf0] %vm612, %v610
      %v614 = vld [vmem:[%s374] sm:$0xff]
      %v615 = vld [vmem:[%s374 + $0x8] sm:$0xf]
      %618 = vst [vmem:[#allocation1] ss:$2 sm:$0xff] %v614
      %s619 = scalar_lea.vmem [#allocation1], 16
      %620 = vst [vmem:[%s619] ss:$2 sm:$0xff] %v615
      %v621 = vld.sshfl [vmem:[#allocation1] sm:$0xff pattern:$0x75316420]
      %v622 = vld.sshfl [vmem:[#allocation1 + $0x8] sm:$0xff pattern:$0x75316420]
      %v623 = vld.sshfl [vmem:[#allocation1 + $0x10] sm:$0xff pattern:$0x75316420]
      %624 = vrot.lane.b32.xlu0 %v621, 88
      %v625 = vpop.permute.xlu0 %624
      %626 = vrot.lane.b32.xlu0 %v622, 88
      %v627 = vpop.permute.xlu0 %626
      %628 = vrot.lane.b32.xlu0 %v623, 88
      %v629 = vpop.permute.xlu0 %628
      %vm630 = vcmask 719872
      %v631 = vsel %vm630, %v625, %v627
      %v632 = vsel %vm630, %v627, %v629
      %636 = vst [vmem:[#allocation2 + $0x48] sm:$0xf] %v631
      %637 = vst [vmem:[#allocation2 + $0x50] sm:$0xf] %v632
      %vm638 = vcmask 715776
      %639 = vst.msk [vmem:[#allocation2 + $0x58] sm:$0xf] %vm638, %v629
      %v640 = vld [vmem:[%s385] sm:$0xf]
      %642 = vst [vmem:[#allocation1] ss:$2 sm:$0xff] %v640
      %v643 = vld.sshfl [vmem:[#allocation1] sm:$0xff pattern:$0x75316420]
      %644 = vrot.lane.b32.xlu0 %v643, 88
      %v645 = vpop.permute.xlu0 %644
      %vm647 = vcmask 1044160
      %648 = vst.msk [vmem:[#allocation2 + $0x58] sm:$0xf] %vm647, %v645
      %v649 = vld [vmem:[%s374] sm:$0xff]
      %v650 = vld [vmem:[%s374 + $0x8] sm:$0xf]
      %s653 = scalar_lea.vmem [#allocation1], 1
      %654 = vst [vmem:[%s653] ss:$2 sm:$0xff] %v649
      %s655 = scalar_lea.vmem [#allocation1], 17
      %656 = vst [vmem:[%s655] ss:$2 sm:$0xff] %v650
      %v657 = vld.sshfl [vmem:[#allocation1] sm:$0xff pattern:$0x75316420]
      %v658 = vld.sshfl [vmem:[#allocation1 + $0x8] sm:$0xff pattern:$0x75316420]
      %v659 = vld.sshfl [vmem:[#allocation1 + $0x10] sm:$0xff pattern:$0x75316420]
      %660 = vrot.lane.b32.xlu0 %v657, 87
      %v661 = vpop.permute.xlu0 %660
      %662 = vrot.lane.b32.xlu0 %v658, 87
      %v663 = vpop.permute.xlu0 %662
      %664 = vrot.lane.b32.xlu0 %v659, 87
      %v665 = vpop.permute.xlu0 %664
      %vm666 = vcmask 711680
      %v667 = vsel %vm666, %v661, %v663
      %v668 = vsel %vm666, %v663, %v665
      %672 = vst [vmem:[#allocation2 + $0x48] sm:$0xf0] %v667
      %673 = vst [vmem:[#allocation2 + $0x50] sm:$0xf0] %v668
      %vm674 = vcmask 711684
      %675 = vst.msk [vmem:[#allocation2 + $0x58] sm:$0xf0] %vm674, %v665
      %v676 = vld [vmem:[%s385] sm:$0xf]
      %s678 = scalar_lea.vmem [#allocation1], 1
      %679 = vst [vmem:[%s678] ss:$2 sm:$0xff] %v676
      %v680 = vld.sshfl [vmem:[#allocation1] sm:$0xff pattern:$0x75316420]
      %681 = vrot.lane.b32.xlu0 %v680, 87
      %v682 = vpop.permute.xlu0 %681
      %vm684 = vcmask 1048252
      %685 = vst.msk [vmem:[#allocation2 + $0x58] sm:$0xf0] %vm684, %v682
      %v686 = vld [vmem:[%s374] sm:$0xff]
      %v687 = vld [vmem:[%s374 + $0x8] sm:$0xf]
      %690 = vst [vmem:[#allocation1] ss:$2 sm:$0xff] %v686
      %s691 = scalar_lea.vmem [#allocation1], 16
      %692 = vst [vmem:[%s691] ss:$2 sm:$0xff] %v687
      %v693 = vld.sshfl [vmem:[#allocation1] sm:$0xff pattern:$0x75316420]
      %v694 = vld.sshfl [vmem:[#allocation1 + $0x8] sm:$0xff pattern:$0x75316420]
      %v695 = vld.sshfl [vmem:[#allocation1 + $0x10] sm:$0xff pattern:$0x75316420]
      %696 = vrot.lane.b32.xlu0 %v693, 86
      %v697 = vpop.permute.xlu0 %696
      %698 = vrot.lane.b32.xlu0 %v694, 86
      %v699 = vpop.permute.xlu0 %698
      %700 = vrot.lane.b32.xlu0 %v695, 86
      %v701 = vpop.permute.xlu0 %700
      %vm702 = vcmask 703488
      %v703 = vsel %vm702, %v697, %v699
      %v704 = vsel %vm702, %v699, %v701
      %708 = vst [vmem:[#allocation2 + $0x60] sm:$0xf] %v703
      %709 = vst [vmem:[#allocation2 + $0x68] sm:$0xf] %v704
      %vm710 = vcmask 699392
      %711 = vst.msk [vmem:[#allocation2 + $0x70] sm:$0xf] %vm710, %v701
      %v712 = vld [vmem:[%s385] sm:$0xf]
      %714 = vst [vmem:[#allocation1] ss:$2 sm:$0xff] %v712
      %v715 = vld.sshfl [vmem:[#allocation1] sm:$0xff pattern:$0x75316420]
      %716 = vrot.lane.b32.xlu0 %v715, 86
      %v717 = vpop.permute.xlu0 %716
      %vm719 = vcmask 1044144
      %720 = vst.msk [vmem:[#allocation2 + $0x70] sm:$0xf] %vm719, %v717
      %v721 = vld [vmem:[%s2] sm:$0xff]
      %v722 = vld [vmem:[#allocation2] sm:$0xff]
      %v723 = vld [vmem:[#allocation2 + $0x8] sm:$0xff]
      %v724 = vld [vmem:[#allocation2 + $0x10] sm:$0xff]
      %v725 = vld [vmem:[#allocation2 + $0x18] sm:$0xff]
      %v726 = vld [vmem:[#allocation2 + $0x20] sm:$0xff]
      %v727 = vld [vmem:[#allocation2 + $0x28] sm:$0xff]
      %v728 = vld [vmem:[#allocation2 + $0x30] sm:$0xff]
      %v729 = vld [vmem:[#allocation2 + $0x38] sm:$0xff]
      %v730 = vld [vmem:[#allocation2 + $0x40] sm:$0xff]
      %v731 = vld [vmem:[#allocation2 + $0x48] sm:$0xff]
      %v732 = vld [vmem:[#allocation2 + $0x50] sm:$0xff]
      %v733 = vld [vmem:[#allocation2 + $0x58] sm:$0xff]
      %v734 = vld [vmem:[#allocation2 + $0x60] sm:$0xf]
      %v735 = vld [vmem:[#allocation2 + $0x68] sm:$0xf]
      %v736 = vld [vmem:[#allocation2 + $0x70] sm:$0xf]
      %v737 = vld [vmem:[%s3] sm:$0xff]
      %739 = vset.pattern.permute.xlu0 0
      %740 = vperm.xlu0 %739, %v737
      %v741 = vpop.permute.xlu0 %740
      %vm743 = vcmask 293888
      %v745 = vsel %vm743, %v721, 0
      %vm747 = vcmask 1043456
      %v749 = vsel %vm747, %v734, 0
      %v752 = vsel %vm747, %v735, 0
      %v755 = vsel %vm747, %v736, 0
      %757 = vmatpush.msra.mxu0 0.0
      %758 = vmatpush.msra.mxu0 0.0
      %759 = vmatpush.msra.mxu0 0.0
      %760 = vmatpush.msra.mxu0 0.0
      %761 = vmatpush.msra.mxu0 0.0
      %762 = vmatpush.msra.mxu0 0.0
      %763 = vmatpush.msra.mxu0 0.0
      %764 = vmatpush.msra.mxu0 0.0
      %765 = vmatpush.msra.mxu0 0.0
      %766 = vmatpush.msra.mxu0 0.0
      %767 = vmatpush.msra.mxu0 0.0
      %768 = vmatpush.msra.mxu0 %v749
      %769 = vmatpush.msra.mxu0 %v731
      %770 = vmatpush.msra.mxu0 %v728
      %771 = vmatpush.msra.mxu0 %v725
      %772 = vmatpush.msra.mxu0 %v722
      %773 = vmatmul.f32.gmra.mxu0 %v745
      %v774 = vpop.f32.mrf.mxu0
      %v775 = vadd.f32 %v741, %v774
      %776 = vdwg.mxu0
      %777 = vmatpush.msra.mxu0 0.0
      %778 = vmatpush.msra.mxu0 0.0
      %779 = vmatpush.msra.mxu0 0.0
      %780 = vmatpush.msra.mxu0 0.0
      %781 = vmatpush.msra.mxu0 0.0
      %782 = vmatpush.msra.mxu0 0.0
      %783 = vmatpush.msra.mxu0 0.0
      %784 = vmatpush.msra.mxu0 0.0
      %785 = vmatpush.msra.mxu0 0.0
      %786 = vmatpush.msra.mxu0 0.0
      %787 = vmatpush.msra.mxu0 0.0
      %788 = vmatpush.msra.mxu0 %v752
      %789 = vmatpush.msra.mxu0 %v732
      %790 = vmatpush.msra.mxu0 %v729
      %791 = vmatpush.msra.mxu0 %v726
      %792 = vmatpush.msra.mxu0 %v723
      %793 = vmatmul.f32.gmra.mxu0 %v745
      %v794 = vpop.f32.mrf.mxu0
      %v795 = vadd.f32 %v741, %v794
      %796 = vdwg.mxu0
      %797 = vmatpush.msra.mxu0 0.0
      %798 = vmatpush.msra.mxu0 0.0
      %799 = vmatpush.msra.mxu0 0.0
      %800 = vmatpush.msra.mxu0 0.0
      %801 = vmatpush.msra.mxu0 0.0
      %802 = vmatpush.msra.mxu0 0.0
      %803 = vmatpush.msra.mxu0 0.0
      %804 = vmatpush.msra.mxu0 0.0
      %805 = vmatpush.msra.mxu0 0.0
      %806 = vmatpush.msra.mxu0 0.0
      %807 = vmatpush.msra.mxu0 0.0
      %808 = vmatpush.msra.mxu0 %v755
      %809 = vmatpush.msra.mxu0 %v733
      %810 = vmatpush.msra.mxu0 %v730
      %811 = vmatpush.msra.mxu0 %v727
      %812 = vmatpush.msra.mxu0 %v724
      %813 = vmatmul.f32.gmra.mxu0 %v745
      %v814 = vpop.f32.mrf.mxu0
      %v815 = vadd.f32 %v741, %v814
      %816 = vdwg.mxu0
      %vm817 = vcmp.ge.f32.partialorder %v775, 0.0
      %vm818 = vcmp.ge.f32.partialorder %v795, 0.0
      %vm819 = vcmp.ge.f32.partialorder %v815, 0.0
      %v820 = vmul.f32 %v775, 0.01
      %v821 = vmul.f32 %v795, 0.01
      %v822 = vmul.f32 %v815, 0.01
      %v823 = vsel %vm817, %v775, %v820
      %v824 = vsel %vm818, %v795, %v821
      %v825 = vsel %vm819, %v815, %v822
      %826 = vst [vmem:[%s401] sm:$0xff] %v823
      %827 = vst [vmem:[%s401 + $0x8] sm:$0xff] %v824
      %828 = vst [vmem:[%s401 + $0x10] sm:$0xff] %v825
      %v829 = vld [vmem:[%s391] sm:$0x7]
      %v831 = vperm.slane %v829, 0
      %v832 = vperm.slane %v829, 1
      %v833 = vperm.slane %v829, 2
      %v837 = vmul.f32 %v823, %v831
      %v838 = vmul.f32 %v824, %v832
      %v839 = vmul.f32 %v825, %v833
      %v840 = vadd.f32 %v837, %v838
      %v841 = vadd.f32 %v840, %v839
      %842 = vadd.xlane.f32.xlu0 %v841
      %v843 = vpop.xlane.xlu0 %842
      %vm844 = vcmask 7168
      %845 = vst.msk [vmem:[%s409] sm:$0xff] %vm844, %v843
      %v846 = vmul.f32 %v837, %v837
      %v847 = vmul.f32 %v838, %v838
      %v848 = vmul.f32 %v839, %v839
      %v849 = vadd.f32 %v846, %v847
      %v850 = vadd.f32 %v849, %v848
      %851 = vadd.xlane.f32.xlu0 %v850
      %v852 = vpop.xlane.xlu0 %851
      %853 = vst.msk [vmem:[%s416] sm:$0xff] %vm844, %v852
      %s854 = smul.u32 3, %s24
      %p855 = scmp.lt.s32.totalorder %s23, 1
      %s856 = scalar_select %p855, %s23, 1
      %p857 = scmp.lt.s32.totalorder %s854, 2
      %s858 = scalar_select %p857, %s854, 2
      %s859 = smul.addr %s856, 3
      %s860 = sadd.s32 %s858, %s859
      %s861 = smul.addr %s860, 8
      %s862 = scalar_lea.vmem %s5, %s861
      %p863 = scmp.lt.s32.totalorder %s23, 1
      %s864 = scalar_select %p863, %s23, 1
      %p865 = scmp.lt.s32.totalorder %s24, 0
      %s866 = scalar_select %p865, %s24, 0
      %s867 = sadd.s32 %s866, %s864
      %s868 = smul.addr %s867, 8
      %s869 = scalar_lea.vmem %s6, %s868
      %p870 = scmp.lt.s32.totalorder %s23, 1
      %s871 = scalar_select %p870, %s23, 1
      %p872 = scmp.lt.s32.totalorder %s24, 0
      %s873 = scalar_select %p872, %s24, 0
      %s874 = sadd.s32 %s873, %s871
      %s875 = smul.addr %s874, 8
      %s876 = scalar_lea.vmem %s7, %s875
      // Predicated region
      $region41: #{cnn2d_block.2} parent=39 // pred_check
        %p877 = pneg %p177
      $region42: #{cnn2d_block.2} parent=39 // pred_check_branch
        %879 = sbr.rel (%p877) target = $region44
      $region43: #{cnn2d_block.2} parent=39 // pred_region
        %s880 = smul.u32 3, %s24
      $region44: #{cnn2d_block.2} parent=39 // pred_fallthru
        _
      // Predicated region
      $region45: #{cnn2d_block.2} parent=39 // pred_check
        %p881 = pneg %p205
      $region46: #{cnn2d_block.2} parent=39 // pred_check_branch
        %883 = sbr.rel (%p881) target = $region48
      $region47: #{cnn2d_block.2} parent=39 // pred_region
        _
      $region48: #{cnn2d_block.2} parent=39 // pred_fallthru
        _
      // Predicated region
      $region49: #{cnn2d_block.2} parent=39 // pred_check
        %p884 = pneg %p233
      $region50: #{cnn2d_block.2} parent=39 // pred_check_branch
        %886 = sbr.rel (%p884) target = $region52
      $region51: #{cnn2d_block.2} parent=39 // pred_region
        _
      $region52: #{cnn2d_block.2} parent=39 // pred_fallthru
        _
    $region40: #{cnn2d_block.2} parent=5 // pred_fallthru
      _
    %p887 = scmp.le.s32.totalorder 2, %s14
    // Predicated region
    $region53: #{cnn2d_block.2} parent=5 // pred_check
      %p888 = pneg %p887
    $region54: #{cnn2d_block.2} parent=5 // pred_check_branch
      %890 = sbr.rel (%p888) target = $region56
    $region55: #{cnn2d_block.2} parent=5 // pred_region
      %s891 = ssub.s32 %s14, 2
      // Predicated region
      $region57: #{cnn2d_block.2} parent=55 // pred_check
        %p892 = pneg %p183
      $region58: #{cnn2d_block.2} parent=55 // pred_check_branch
        %894 = sbr.rel (%p892) target = $region60
      $region59: #{cnn2d_block.2} parent=55 // pred_region
        %s895 = smul.u32 3, %s26
        %p896 = scmp.lt.s32.totalorder %s25, 1
        %s897 = scalar_select %p896, %s25, 1
        %p898 = scmp.lt.s32.totalorder %s895, 2
        %s899 = scalar_select %p898, %s895, 2
        %s900 = smul.addr %s897, 3
        %s901 = sadd.s32 %s899, %s900
        %s902 = smul.addr %s901, 8
        %s903 = scalar_lea.vmem %s5, %s902
      $region60: #{cnn2d_block.2} parent=55 // pred_fallthru
        _
      // Predicated region
      $region61: #{cnn2d_block.2} parent=55 // pred_check
        %p904 = pneg %p211
      $region62: #{cnn2d_block.2} parent=55 // pred_check_branch
        %906 = sbr.rel (%p904) target = $region64
      $region63: #{cnn2d_block.2} parent=55 // pred_region
        %p907 = scmp.lt.s32.totalorder %s25, 1
        %s908 = scalar_select %p907, %s25, 1
        %p909 = scmp.lt.s32.totalorder %s26, 0
        %s910 = scalar_select %p909, %s26, 0
        %s911 = sadd.s32 %s910, %s908
        %s912 = smul.addr %s911, 8
        %s913 = scalar_lea.vmem %s6, %s912
      $region64: #{cnn2d_block.2} parent=55 // pred_fallthru
        _
      // Predicated region
      $region65: #{cnn2d_block.2} parent=55 // pred_check
        %p914 = pneg %p239
      $region66: #{cnn2d_block.2} parent=55 // pred_check_branch
        %916 = sbr.rel (%p914) target = $region68
      $region67: #{cnn2d_block.2} parent=55 // pred_region
        %p917 = scmp.lt.s32.totalorder %s25, 1
        %s918 = scalar_select %p917, %s25, 1
        %p919 = scmp.lt.s32.totalorder %s26, 0
        %s920 = scalar_select %p919, %s26, 0
        %s921 = sadd.s32 %s920, %s918
        %s922 = smul.addr %s921, 8
        %s923 = scalar_lea.vmem %s7, %s922
      $region68: #{cnn2d_block.2} parent=55 // pred_fallthru
        _
    $region56: #{cnn2d_block.2} parent=5 // pred_fallthru
      _
  $region6: #{cnn2d_block.2} parent=0 // loop_footer
    %s18 = sadd.s32 1, %s14
  $region7: #{cnn2d_block.2} parent=0 // loop_footer_branch
    %13 = sbr.rel target = $region3
  $region8: #{cnn2d_block.2} parent=0 // loop_exit
    _

// kernel: cnn2d_block.3
$region0: #{cnn2d_block.3}
  #allocation0 [shape = 'u32[]', space=smem, size = 0x4, offset = 0x4, fixed_abs, tag = 'smem constant byte address 0x4 - core index']
  #allocation1 [shape = 'u32[72,128]{1,0:T(1,128)}', space=vmem, size = 0x9000, scoped, tag = 'internal scratch']
  %s0 = inlined_call_operand.vmem [shape: f32[2,8,384], index: 0, kind: input, shape index: {}]
  %s1 = inlined_call_operand.vmem [shape: f32[8,1], index: 1, kind: input, shape index: {}]
  %s2 = inlined_call_operand.vmem [shape: f32[8,1], index: 2, kind: input, shape index: {}]
  %s3 = inlined_call_operand.vmem [shape: f32[1,384], index: 3, kind: input, shape index: {}]
  %s4 = inlined_call_operand.vmem [shape: f32[2,8,384], index: 4, kind: output, shape index: {}]
  %s5 = sld [smem:[#allocation0]]
  $region49: #{cnn2d_block.3} parent=0
    _
  %s7 = ssub.s32 1, %s5
  %s8 = scalar_select 0, %s7, %s5
  loop: start=0, step=1, limit=4
  $region2: #{cnn2d_block.3} parent=0 // loop_pre_header
    _
  $region3: #{cnn2d_block.3} parent=0 // loop_header
    %s10 = sphi 0, %s14
    %p11 = scmp.ge.s32.totalorder %s10, 4
    %s20 = sphi 0, %s22
    %s23 = sphi 0, %s20
    %s24 = sphi 0, %s23
    %s40 = sphi 0, %s24
    %s44 = sphi 0, %s44
    %s46 = sphi 0, %s44
    %s47 = sphi 0, %s46
    %s61 = sphi 0, %s47
    %s65 = sphi 0, %s65
    %s67 = sphi 0, %s65
    %s68 = sphi 0, %s67
    %s82 = sphi 0, %s68
    %s86 = sphi 0, %s86
    %s88 = sphi 0, %s86
    %s89 = sphi 0, %s88
    %s103 = sphi 0, %s89
    %s109 = sphi 0, %s111
    %s112 = sphi 0, %s109
    %s113 = sphi 0, %s112
    %s129 = sphi 0, %s113
  $region4: #{cnn2d_block.3} parent=0 // loop_header_branch
    %13 = sbr.rel (%p11) target = $region8
  $region5: #{cnn2d_block.3} parent=0 // loop_body
    %s15 = ssub.s32 %s10, 1
    %s16 = ssub.s32 %s10, 2
    %s17 = sadd.s32 %s10, 1
    %s18 = ssub.s32 %s10, %s17
    %p19 = scmp.eq.s32.totalorder %s18, 0
    %s21 = sadd.s32 %s20, 1
    %s22 = scalar_select %p19, %s20, %s21
    %p25 = pneg %p19
    %p26 = scmp.eq.s32.totalorder %s10, 1
    %p27 = por %p25, %p26
    %p28 = scmp.ne.s32.totalorder %s20, %s23
    %p29 = scmp.eq.s32.totalorder %s10, 0
    %p30 = por %p28, %p29
    %p31 = scmp.ne.s32.totalorder %s20, %s23
    %p32 = scmp.eq.s32.totalorder %s15, 1
    %p33 = por %p31, %p32
    %p34 = scmp.ne.s32.totalorder %s23, %s24
    %p35 = scmp.eq.s32.totalorder %s15, 0
    %p36 = por %p34, %p35
    %p37 = scmp.ne.s32.totalorder %s23, %s24
    %p38 = scmp.eq.s32.totalorder %s16, 1
    %p39 = por %p37, %p38
    %p41 = scmp.ne.s32.totalorder %s24, %s40
    %p42 = scmp.eq.s32.totalorder %s16, 0
    %p43 = por %p41, %p42
    %s45 = sadd.s32 %s44, 1
    %p48 = scmp.eq.s32.totalorder %s10, 1
    %p49 = scmp.ne.s32.totalorder %s44, %s46
    %p50 = scmp.eq.s32.totalorder %s10, 0
    %p51 = por %p49, %p50
    %p52 = scmp.ne.s32.totalorder %s44, %s46
    %p53 = scmp.eq.s32.totalorder %s15, 1
    %p54 = por %p52, %p53
    %p55 = scmp.ne.s32.totalorder %s46, %s47
    %p56 = scmp.eq.s32.totalorder %s15, 0
    %p57 = por %p55, %p56
    %p58 = scmp.ne.s32.totalorder %s46, %s47
    %p59 = scmp.eq.s32.totalorder %s16, 1
    %p60 = por %p58, %p59
    %p62 = scmp.ne.s32.totalorder %s47, %s61
    %p63 = scmp.eq.s32.totalorder %s16, 0
    %p64 = por %p62, %p63
    %s66 = sadd.s32 %s65, 1
    %p69 = scmp.eq.s32.totalorder %s10, 1
    %p70 = scmp.ne.s32.totalorder %s65, %s67
    %p71 = scmp.eq.s32.totalorder %s10, 0
    %p72 = por %p70, %p71
    %p73 = scmp.ne.s32.totalorder %s65, %s67
    %p74 = scmp.eq.s32.totalorder %s15, 1
    %p75 = por %p73, %p74
    %p76 = scmp.ne.s32.totalorder %s67, %s68
    %p77 = scmp.eq.s32.totalorder %s15, 0
    %p78 = por %p76, %p77
    %p79 = scmp.ne.s32.totalorder %s67, %s68
    %p80 = scmp.eq.s32.totalorder %s16, 1
    %p81 = por %p79, %p80
    %p83 = scmp.ne.s32.totalorder %s68, %s82
    %p84 = scmp.eq.s32.totalorder %s16, 0
    %p85 = por %p83, %p84
    %s87 = sadd.s32 %s86, 1
    %p90 = scmp.eq.s32.totalorder %s10, 1
    %p91 = scmp.ne.s32.totalorder %s86, %s88
    %p92 = scmp.eq.s32.totalorder %s10, 0
    %p93 = por %p91, %p92
    %p94 = scmp.ne.s32.totalorder %s86, %s88
    %p95 = scmp.eq.s32.totalorder %s15, 1
    %p96 = por %p94, %p95
    %p97 = scmp.ne.s32.totalorder %s88, %s89
    %p98 = scmp.eq.s32.totalorder %s15, 0
    %p99 = por %p97, %p98
    %p100 = scmp.ne.s32.totalorder %s88, %s89
    %p101 = scmp.eq.s32.totalorder %s16, 1
    %p102 = por %p100, %p101
    %p104 = scmp.ne.s32.totalorder %s89, %s103
    %p105 = scmp.eq.s32.totalorder %s16, 0
    %p106 = por %p104, %p105
    %s107 = ssub.s32 %s10, %s17
    %p108 = scmp.eq.s32.totalorder %s107, 0
    %s110 = sadd.s32 %s109, 1
    %s111 = scalar_select %p108, %s109, %s110
    %p114 = pneg %p108
    %p115 = scmp.eq.s32.totalorder %s10, 1
    %p116 = por %p114, %p115
    %p117 = scmp.ne.s32.totalorder %s109, %s112
    %p118 = scmp.eq.s32.totalorder %s10, 0
    %p119 = por %p117, %p118
    %p120 = scmp.ne.s32.totalorder %s109, %s112
    %p121 = scmp.eq.s32.totalorder %s15, 1
    %p122 = por %p120, %p121
    %p123 = scmp.ne.s32.totalorder %s112, %s113
    %p124 = scmp.eq.s32.totalorder %s15, 0
    %p125 = por %p123, %p124
    %p126 = scmp.ne.s32.totalorder %s112, %s113
    %p127 = scmp.eq.s32.totalorder %s16, 1
    %p128 = por %p126, %p127
    %p130 = scmp.ne.s32.totalorder %s113, %s129
    %p131 = scmp.eq.s32.totalorder %s16, 0
    %p132 = por %p130, %p131
    %p133 = scmp.le.s32.totalorder 1, %s10
    %p134 = scmp.lt.s32.totalorder %s10, 3
    %p135 = pnand %p133, %p134
    %p136 = pneg %p135
    // Predicated region
    $region9: #{cnn2d_block.3} parent=5 // pred_check
      _
    $region10: #{cnn2d_block.3} parent=5 // pred_check_branch
      %138 = sbr.rel (%p135) target = $region12
    $region11: #{cnn2d_block.3} parent=5 // pred_region
      %s139 = ssub.s32 %s10, 1
      // Predicated region
      $region13: #{cnn2d_block.3} parent=11 // pred_check
        %p140 = pneg %p57
      $region14: #{cnn2d_block.3} parent=11 // pred_check_branch
        %142 = sbr.rel (%p140) target = $region16
      $region15: #{cnn2d_block.3} parent=11 // pred_region
        _
      $region16: #{cnn2d_block.3} parent=11 // pred_fallthru
        _
      // Predicated region
      $region17: #{cnn2d_block.3} parent=11 // pred_check
        %p143 = pneg %p78
      $region18: #{cnn2d_block.3} parent=11 // pred_check_branch
        %145 = sbr.rel (%p143) target = $region20
      $region19: #{cnn2d_block.3} parent=11 // pred_region
        _
      $region20: #{cnn2d_block.3} parent=11 // pred_fallthru
        _
      // Predicated region
      $region21: #{cnn2d_block.3} parent=11 // pred_check
        %p146 = pneg %p99
      $region22: #{cnn2d_block.3} parent=11 // pred_check_branch
        %148 = sbr.rel (%p146) target = $region24
      $region23: #{cnn2d_block.3} parent=11 // pred_region
        _
      $region24: #{cnn2d_block.3} parent=11 // pred_fallthru
        _
    $region12: #{cnn2d_block.3} parent=5 // pred_fallthru
      _
    %p149 = scmp.lt.s32.totalorder %s10, 2
    // Predicated region
    $region25: #{cnn2d_block.3} parent=5 // pred_check
      %p150 = pneg %p149
    $region26: #{cnn2d_block.3} parent=5 // pred_check_branch
      %152 = sbr.rel (%p150) target = $region28
    $region27: #{cnn2d_block.3} parent=5 // pred_region
      // Predicated region
      $region29: #{cnn2d_block.3} parent=27 // pred_check
        %p153 = pneg %p30
      $region30: #{cnn2d_block.3} parent=27 // pred_check_branch
        %155 = sbr.rel (%p153) target = $region32
      $region31: #{cnn2d_block.3} parent=27 // pred_region
        %p156 = scmp.lt.s32.totalorder %s10, 1
        %s157 = scalar_select %p156, %s10, 1
        %s158 = smul.addr %s157, 3
        %s159 = smul.addr %s158, 8
        %s160 = scalar_lea.vmem %s0, %s159
      $region32: #{cnn2d_block.3} parent=27 // pred_fallthru
        _
    $region28: #{cnn2d_block.3} parent=5 // pred_fallthru
      _
    %p161 = scmp.le.s32.totalorder 1, %s10
    %p162 = scmp.lt.s32.totalorder %s10, 3
    %p163 = pnand %p161, %p162
    %p164 = pneg %p163
    // Predicated region
    $region33: #{cnn2d_block.3} parent=5 // pred_check
      _
    $region34: #{cnn2d_block.3} parent=5 // pred_check_branch
      %166 = sbr.rel (%p163) target = $region36
    $region35: #{cnn2d_block.3} parent=5 // pred_region
      %s167 = ssub.s32 %s10, 1
      %p168 = scmp.lt.s32.totalorder %s15, 1
      %s169 = scalar_select %p168, %s15, 1
      %s170 = smul.addr %s169, 3
      %s171 = smul.addr %s170, 8
      %s172 = scalar_lea.vmem %s0, %s171
      %p173 = pneg %p36
      %p174 = pneg %p33
      %p175 = pneg %p57
      %p176 = pneg %p54
      %p177 = pneg %p78
      %p178 = pneg %p75
      %p179 = pneg %p99
      %p180 = pneg %p96
      %p181 = pneg %p125
      %p182 = pneg %p122
      %p183 = scmp.lt.s32.totalorder %s15, 1
      %s184 = scalar_select %p183, %s15, 1
      %s185 = smul.addr %s184, 3
      %s186 = smul.addr %s185, 8
      %s187 = scalar_lea.vmem %s4, %s186
      %p188 = scmp.lt.s32.totalorder %s15, 1
      %s189 = scalar_select %p188, %s15, 1
      %s190 = smul.addr %s189, 3
      %s191 = smul.addr %s190, 8
      %s192 = scalar_lea.vmem %s0, %s191
      %p193 = scmp.lt.s32.totalorder %s15, 1
      %s194 = scalar_select %p193, %s15, 1
      %s195 = smul.addr %s194, 3
      %s196 = smul.addr %s195, 8
      %s197 = scalar_lea.vmem %s4, %s196
      %v198 = vlaneseq
      %v199 = vand.u32 %v198, 127
      %v200 = vadd.s32 %v199, 128
      %v201 = vadd.s32 %v199, 256
      %v202 = vld [vmem:[%s192] sm:$0xff]
      %v203 = vld [vmem:[%s192 + $0x8] sm:$0xff]
      %v204 = vld [vmem:[%s192 + $0x10] sm:$0xff]
      %v205 = vld [vmem:[%s1] sm:$0xff]
      %207 = vset.pattern.permute.xlu0 0
      %208 = vperm.xlu0 %207, %v205
      %v209 = vpop.permute.xlu0 %208
      %v211 = vmul.f32 %v202, %v209
      %v212 = vmul.f32 %v203, %v209
      %v213 = vmul.f32 %v204, %v209
      %v214 = vld [vmem:[%s2] sm:$0xff]
      %216 = vset.pattern.permute.xlu0 0
      %217 = vperm.xlu0 %216, %v214
      %v218 = vpop.permute.xlu0 %217
      %v220 = vadd.f32 %v211, %v218
      %v221 = vadd.f32 %v212, %v218
      %v222 = vadd.f32 %v213, %v218
      %v223 = vld [vmem:[%s3] sm:$0x7]
      %vm224 = vcmp.gt.f32.partialorder %v223, 0.0
      %v225 = vsel %vm224, 1, 0
      %v226 = vperm.slane %v225, 0
      %v227 = vperm.slane %v225, 1
      %v228 = vperm.slane %v225, 2
      %vm229 = vcmp.eq.s32.totalorder %v226, 1
      %vm230 = vcmp.eq.s32.totalorder %v227, 1
      %vm231 = vcmp.eq.s32.totalorder %v228, 1
      %v232 = vsel %vm229, %v220, -inf
      %v233 = vsel %vm230, %v221, -inf
      %v234 = vsel %vm231, %v222, -inf
      %235 = vrot.lane.b32.xlu0 %v232, 127
      %v236 = vpop.permute.xlu0 %235
      %237 = vrot.lane.b32.xlu0 %v233, 127
      %v238 = vpop.permute.xlu0 %237
      %239 = vrot.lane.b32.xlu0 %v234, 127
      %v240 = vpop.permute.xlu0 %239
      %vm241 = vcmp.lt.s32.totalorder %v199, 127
      %v242 = vsel %vm241, %v238, %v240
      %v243 = vsel %vm241, %v236, %v238
      %v244 = vsel %vm241, %v240, %v236
      %v245 = vadd.s32 %v199, 1
      %v246 = vadd.s32 %v200, 1
      %v247 = vadd.s32 %v201, 1
      %vm248 = vcmp.ge.s32.totalorder %v245, 0
      %vm249 = vcmp.ge.s32.totalorder %v246, 0
      %vm250 = vcmp.ge.s32.totalorder %v247, 0
      %vm251 = vcmp.lt.s32.totalorder %v245, 384
      %vm252 = vcmp.lt.s32.totalorder %v246, 384
      %vm253 = vcmp.lt.s32.totalorder %v247, 384
      %vm254 = vmand %vm248, %vm251
      %vm255 = vmand %vm249, %vm252
      %vm256 = vmand %vm250, %vm253
      %v257 = vsel %vm254, 1, 0
      %v258 = vsel %vm255, 1, 0
      %v259 = vsel %vm256, 1, 0
      %vm260 = vcmp.eq.s32.totalorder %v257, 1
      %vm261 = vcmp.eq.s32.totalorder %v258, 1
      %vm262 = vcmp.eq.s32.totalorder %v259, 1
      %v263 = vsel %vm260, %v243, -inf
      %v264 = vsel %vm261, %v242, -inf
      %v265 = vsel %vm262, %v244, -inf
      %v266 = vmax.f32 %v232, %v263
      %v267 = vmax.f32 %v233, %v264
      %v268 = vmax.f32 %v234, %v265
      %269 = vrot.lane.b32.xlu0 %v232, 1
      %v270 = vpop.permute.xlu0 %269
      %271 = vrot.lane.b32.xlu0 %v233, 1
      %v272 = vpop.permute.xlu0 %271
      %273 = vrot.lane.b32.xlu0 %v234, 1
      %v274 = vpop.permute.xlu0 %273
      %vm275 = vcmp.lt.s32.totalorder %v199, 1
      %v276 = vsel %vm275, %v272, %v274
      %v277 = vsel %vm275, %v270, %v272
      %v278 = vsel %vm275, %v274, %v270
      %v279 = vadd.s32 %v199, 4294967295
      %v280 = vadd.s32 %v200, 4294967295
      %v281 = vadd.s32 %v201, 4294967295
      %vm282 = vcmp.ge.s32.totalorder %v279, 0
      %vm283 = vcmp.ge.s32.totalorder %v280, 0
      %vm284 = vcmp.ge.s32.totalorder %v281, 0
      %vm285 = vcmp.lt.s32.totalorder %v279, 384
      %vm286 = vcmp.lt.s32.totalorder %v280, 384
      %vm287 = vcmp.lt.s32.totalorder %v281, 384
      %vm288 = vmand %vm282, %vm285
      %vm289 = vmand %vm283, %vm286
      %vm290 = vmand %vm284, %vm287
      %v291 = vsel %vm288, 1, 0
      %v292 = vsel %vm289, 1, 0
      %v293 = vsel %vm290, 1, 0
      %vm294 = vcmp.eq.s32.totalorder %v291, 1
      %vm295 = vcmp.eq.s32.totalorder %v292, 1
      %vm296 = vcmp.eq.s32.totalorder %v293, 1
      %v297 = vsel %vm294, %v278, -inf
      %v298 = vsel %vm295, %v277, -inf
      %v299 = vsel %vm296, %v276, -inf
      %v300 = vmax.f32 %v266, %v297
      %v301 = vmax.f32 %v267, %v298
      %v302 = vmax.f32 %v268, %v299
      %303 = vrot.lane.b32.xlu0 %v232, 126
      %v304 = vpop.permute.xlu0 %303
      %305 = vrot.lane.b32.xlu0 %v233, 126
      %v306 = vpop.permute.xlu0 %305
      %307 = vrot.lane.b32.xlu0 %v234, 126
      %v308 = vpop.permute.xlu0 %307
      %vm309 = vcmp.lt.s32.totalorder %v199, 126
      %v310 = vsel %vm309, %v306, %v308
      %v311 = vsel %vm309, %v304, %v306
      %v312 = vsel %vm309, %v308, %v304
      %v313 = vadd.s32 %v199, 2
      %v314 = vadd.s32 %v200, 2
      %v315 = vadd.s32 %v201, 2
      %vm316 = vcmp.ge.s32.totalorder %v313, 0
      %vm317 = vcmp.ge.s32.totalorder %v314, 0
      %vm318 = vcmp.ge.s32.totalorder %v315, 0
      %vm319 = vcmp.lt.s32.totalorder %v313, 384
      %vm320 = vcmp.lt.s32.totalorder %v314, 384
      %vm321 = vcmp.lt.s32.totalorder %v315, 384
      %vm322 = vmand %vm316, %vm319
      %vm323 = vmand %vm317, %vm320
      %vm324 = vmand %vm318, %vm321
      %v325 = vsel %vm322, 1, 0
      %v326 = vsel %vm323, 1, 0
      %v327 = vsel %vm324, 1, 0
      %vm328 = vcmp.eq.s32.totalorder %v325, 1
      %vm329 = vcmp.eq.s32.totalorder %v326, 1
      %vm330 = vcmp.eq.s32.totalorder %v327, 1
      %v331 = vsel %vm328, %v311, -inf
      %v332 = vsel %vm329, %v310, -inf
      %v333 = vsel %vm330, %v312, -inf
      %v334 = vmax.f32 %v300, %v331
      %v335 = vmax.f32 %v301, %v332
      %v336 = vmax.f32 %v302, %v333
      %337 = vrot.lane.b32.xlu0 %v232, 2
      %v338 = vpop.permute.xlu0 %337
      %339 = vrot.lane.b32.xlu0 %v233, 2
      %v340 = vpop.permute.xlu0 %339
      %341 = vrot.lane.b32.xlu0 %v234, 2
      %v342 = vpop.permute.xlu0 %341
      %vm343 = vcmp.lt.s32.totalorder %v199, 2
      %v344 = vsel %vm343, %v340, %v342
      %v345 = vsel %vm343, %v338, %v340
      %v346 = vsel %vm343, %v342, %v338
      %v347 = vadd.s32 %v199, 4294967294
      %v348 = vadd.s32 %v200, 4294967294
      %v349 = vadd.s32 %v201, 4294967294
      %vm350 = vcmp.ge.s32.totalorder %v347, 0
      %vm351 = vcmp.ge.s32.totalorder %v348, 0
      %vm352 = vcmp.ge.s32.totalorder %v349, 0
      %vm353 = vcmp.lt.s32.totalorder %v347, 384
      %vm354 = vcmp.lt.s32.totalorder %v348, 384
      %vm355 = vcmp.lt.s32.totalorder %v349, 384
      %vm356 = vmand %vm350, %vm353
      %vm357 = vmand %vm351, %vm354
      %vm358 = vmand %vm352, %vm355
      %v359 = vsel %vm356, 1, 0
      %v360 = vsel %vm357, 1, 0
      %v361 = vsel %vm358, 1, 0
      %vm362 = vcmp.eq.s32.totalorder %v359, 1
      %vm363 = vcmp.eq.s32.totalorder %v360, 1
      %vm364 = vcmp.eq.s32.totalorder %v361, 1
      %v365 = vsel %vm362, %v346, -inf
      %v366 = vsel %vm363, %v345, -inf
      %v367 = vsel %vm364, %v344, -inf
      %v368 = vmax.f32 %v334, %v365
      %v369 = vmax.f32 %v335, %v366
      %v370 = vmax.f32 %v336, %v367
      %371 = vrot.lane.b32.xlu0 %v232, 125
      %v372 = vpop.permute.xlu0 %371
      %373 = vrot.lane.b32.xlu0 %v233, 125
      %v374 = vpop.permute.xlu0 %373
      %375 = vrot.lane.b32.xlu0 %v234, 125
      %v376 = vpop.permute.xlu0 %375
      %vm377 = vcmp.lt.s32.totalorder %v199, 125
      %v378 = vsel %vm377, %v374, %v376
      %v379 = vsel %vm377, %v372, %v374
      %v380 = vsel %vm377, %v376, %v372
      %v381 = vadd.s32 %v199, 3
      %v382 = vadd.s32 %v200, 3
      %v383 = vadd.s32 %v201, 3
      %vm384 = vcmp.ge.s32.totalorder %v381, 0
      %vm385 = vcmp.ge.s32.totalorder %v382, 0
      %vm386 = vcmp.ge.s32.totalorder %v383, 0
      %vm387 = vcmp.lt.s32.totalorder %v381, 384
      %vm388 = vcmp.lt.s32.totalorder %v382, 384
      %vm389 = vcmp.lt.s32.totalorder %v383, 384
      %vm390 = vmand %vm384, %vm387
      %vm391 = vmand %vm385, %vm388
      %vm392 = vmand %vm386, %vm389
      %v393 = vsel %vm390, 1, 0
      %v394 = vsel %vm391, 1, 0
      %v395 = vsel %vm392, 1, 0
      %vm396 = vcmp.eq.s32.totalorder %v393, 1
      %vm397 = vcmp.eq.s32.totalorder %v394, 1
      %vm398 = vcmp.eq.s32.totalorder %v395, 1
      %v399 = vsel %vm396, %v379, -inf
      %v400 = vsel %vm397, %v378, -inf
      %v401 = vsel %vm398, %v380, -inf
      %v402 = vmax.f32 %v368, %v399
      %v403 = vmax.f32 %v369, %v400
      %v404 = vmax.f32 %v370, %v401
      %405 = vrot.lane.b32.xlu0 %v232, 3
      %v406 = vpop.permute.xlu0 %405
      %407 = vrot.lane.b32.xlu0 %v233, 3
      %v408 = vpop.permute.xlu0 %407
      %409 = vrot.lane.b32.xlu0 %v234, 3
      %v410 = vpop.permute.xlu0 %409
      %vm411 = vcmp.lt.s32.totalorder %v199, 3
      %v412 = vsel %vm411, %v408, %v410
      %v413 = vsel %vm411, %v406, %v408
      %v414 = vsel %vm411, %v410, %v406
      %v415 = vadd.s32 %v199, 4294967293
      %v416 = vadd.s32 %v200, 4294967293
      %v417 = vadd.s32 %v201, 4294967293
      %vm418 = vcmp.ge.s32.totalorder %v415, 0
      %vm419 = vcmp.ge.s32.totalorder %v416, 0
      %vm420 = vcmp.ge.s32.totalorder %v417, 0
      %vm421 = vcmp.lt.s32.totalorder %v415, 384
      %vm422 = vcmp.lt.s32.totalorder %v416, 384
      %vm423 = vcmp.lt.s32.totalorder %v417, 384
      %vm424 = vmand %vm418, %vm421
      %vm425 = vmand %vm419, %vm422
      %vm426 = vmand %vm420, %vm423
      %v427 = vsel %vm424, 1, 0
      %v428 = vsel %vm425, 1, 0
      %v429 = vsel %vm426, 1, 0
      %vm430 = vcmp.eq.s32.totalorder %v427, 1
      %vm431 = vcmp.eq.s32.totalorder %v428, 1
      %vm432 = vcmp.eq.s32.totalorder %v429, 1
      %v433 = vsel %vm430, %v414, -inf
      %v434 = vsel %vm431, %v413, -inf
      %v435 = vsel %vm432, %v412, -inf
      %v436 = vmax.f32 %v402, %v433
      %v437 = vmax.f32 %v403, %v434
      %v438 = vmax.f32 %v404, %v435
      %439 = vrot.lane.b32.xlu0 %v232, 124
      %v440 = vpop.permute.xlu0 %439
      %441 = vrot.lane.b32.xlu0 %v233, 124
      %v442 = vpop.permute.xlu0 %441
      %443 = vrot.lane.b32.xlu0 %v234, 124
      %v444 = vpop.permute.xlu0 %443
      %vm445 = vcmp.lt.s32.totalorder %v199, 124
      %v446 = vsel %vm445, %v442, %v444
      %v447 = vsel %vm445, %v440, %v442
      %v448 = vsel %vm445, %v444, %v440
      %v449 = vadd.s32 %v199, 4
      %v450 = vadd.s32 %v200, 4
      %v451 = vadd.s32 %v201, 4
      %vm452 = vcmp.ge.s32.totalorder %v449, 0
      %vm453 = vcmp.ge.s32.totalorder %v450, 0
      %vm454 = vcmp.ge.s32.totalorder %v451, 0
      %vm455 = vcmp.lt.s32.totalorder %v449, 384
      %vm456 = vcmp.lt.s32.totalorder %v450, 384
      %vm457 = vcmp.lt.s32.totalorder %v451, 384
      %vm458 = vmand %vm452, %vm455
      %vm459 = vmand %vm453, %vm456
      %vm460 = vmand %vm454, %vm457
      %v461 = vsel %vm458, 1, 0
      %v462 = vsel %vm459, 1, 0
      %v463 = vsel %vm460, 1, 0
      %vm464 = vcmp.eq.s32.totalorder %v461, 1
      %vm465 = vcmp.eq.s32.totalorder %v462, 1
      %vm466 = vcmp.eq.s32.totalorder %v463, 1
      %v467 = vsel %vm464, %v447, -inf
      %v468 = vsel %vm465, %v446, -inf
      %v469 = vsel %vm466, %v448, -inf
      %v470 = vmax.f32 %v436, %v467
      %v471 = vmax.f32 %v437, %v468
      %v472 = vmax.f32 %v438, %v469
      %473 = vrot.lane.b32.xlu0 %v232, 4
      %v474 = vpop.permute.xlu0 %473
      %475 = vrot.lane.b32.xlu0 %v233, 4
      %v476 = vpop.permute.xlu0 %475
      %477 = vrot.lane.b32.xlu0 %v234, 4
      %v478 = vpop.permute.xlu0 %477
      %vm479 = vcmp.lt.s32.totalorder %v199, 4
      %v480 = vsel %vm479, %v476, %v478
      %v481 = vsel %vm479, %v474, %v476
      %v482 = vsel %vm479, %v478, %v474
      %v483 = vadd.s32 %v199, 4294967292
      %v484 = vadd.s32 %v200, 4294967292
      %v485 = vadd.s32 %v201, 4294967292
      %vm486 = vcmp.ge.s32.totalorder %v483, 0
      %vm487 = vcmp.ge.s32.totalorder %v484, 0
      %vm488 = vcmp.ge.s32.totalorder %v485, 0
      %vm489 = vcmp.lt.s32.totalorder %v483, 384
      %vm490 = vcmp.lt.s32.totalorder %v484, 384
      %vm491 = vcmp.lt.s32.totalorder %v485, 384
      %vm492 = vmand %vm486, %vm489
      %vm493 = vmand %vm487, %vm490
      %vm494 = vmand %vm488, %vm491
      %v495 = vsel %vm492, 1, 0
      %v496 = vsel %vm493, 1, 0
      %v497 = vsel %vm494, 1, 0
      %vm498 = vcmp.eq.s32.totalorder %v495, 1
      %vm499 = vcmp.eq.s32.totalorder %v496, 1
      %vm500 = vcmp.eq.s32.totalorder %v497, 1
      %v501 = vsel %vm498, %v482, -inf
      %v502 = vsel %vm499, %v481, -inf
      %v503 = vsel %vm500, %v480, -inf
      %v504 = vmax.f32 %v470, %v501
      %v505 = vmax.f32 %v471, %v502
      %v506 = vmax.f32 %v472, %v503
      %507 = vrot.lane.b32.xlu0 %v504, 108
      %v508 = vpop.permute.xlu0 %507
      %509 = vrot.lane.b32.xlu0 %v505, 108
      %v510 = vpop.permute.xlu0 %509
      %511 = vrot.lane.b32.xlu0 %v506, 108
      %v512 = vpop.permute.xlu0 %511
      %vm513 = vcmp.lt.s32.totalorder %v199, 108
      %v514 = vsel %vm513, %v510, %v512
      %v515 = vsel %vm513, %v508, %v510
      %v516 = vsel %vm513, %v512, %v508
      %v517 = vadd.s32 %v199, 20
      %v518 = vadd.s32 %v200, 20
      %v519 = vadd.s32 %v201, 20
      %vm520 = vcmp.ge.s32.totalorder %v517, 0
      %vm521 = vcmp.ge.s32.totalorder %v518, 0
      %vm522 = vcmp.ge.s32.totalorder %v519, 0
      %vm523 = vcmp.lt.s32.totalorder %v517, 384
      %vm524 = vcmp.lt.s32.totalorder %v518, 384
      %vm525 = vcmp.lt.s32.totalorder %v519, 384
      %vm526 = vmand %vm520, %vm523
      %vm527 = vmand %vm521, %vm524
      %vm528 = vmand %vm522, %vm525
      %v529 = vsel %vm526, 1, 0
      %v530 = vsel %vm527, 1, 0
      %v531 = vsel %vm528, 1, 0
      %vm532 = vcmp.eq.s32.totalorder %v529, 1
      %vm533 = vcmp.eq.s32.totalorder %v530, 1
      %vm534 = vcmp.eq.s32.totalorder %v531, 1
      %v535 = vsel %vm532, %v515, -inf
      %v536 = vsel %vm533, %v514, -inf
      %v537 = vsel %vm534, %v516, -inf
      %v538 = vmax.f32 %v504, %v535
      %v539 = vmax.f32 %v505, %v536
      %v540 = vmax.f32 %v506, %v537
      %541 = vrot.lane.b32.xlu0 %v504, 20
      %v542 = vpop.permute.xlu0 %541
      %543 = vrot.lane.b32.xlu0 %v505, 20
      %v544 = vpop.permute.xlu0 %543
      %545 = vrot.lane.b32.xlu0 %v506, 20
      %v546 = vpop.permute.xlu0 %545
      %vm547 = vcmp.lt.s32.totalorder %v199, 20
      %v548 = vsel %vm547, %v544, %v546
      %v549 = vsel %vm547, %v542, %v544
      %v550 = vsel %vm547, %v546, %v542
      %v551 = vadd.s32 %v199, 4294967276
      %v552 = vadd.s32 %v200, 4294967276
      %v553 = vadd.s32 %v201, 4294967276
      %vm554 = vcmp.ge.s32.totalorder %v551, 0
      %vm555 = vcmp.ge.s32.totalorder %v552, 0
      %vm556 = vcmp.ge.s32.totalorder %v553, 0
      %vm557 = vcmp.lt.s32.totalorder %v551, 384
      %vm558 = vcmp.lt.s32.totalorder %v552, 384
      %vm559 = vcmp.lt.s32.totalorder %v553, 384
      %vm560 = vmand %vm554, %vm557
      %vm561 = vmand %vm555, %vm558
      %vm562 = vmand %vm556, %vm559
      %v563 = vsel %vm560, 1, 0
      %v564 = vsel %vm561, 1, 0
      %v565 = vsel %vm562, 1, 0
      %vm566 = vcmp.eq.s32.totalorder %v563, 1
      %vm567 = vcmp.eq.s32.totalorder %v564, 1
      %vm568 = vcmp.eq.s32.totalorder %v565, 1
      %v569 = vsel %vm566, %v550, -inf
      %v570 = vsel %vm567, %v549, -inf
      %v571 = vsel %vm568, %v548, -inf
      %v572 = vmax.f32 %v538, %v569
      %v573 = vmax.f32 %v539, %v570
      %v574 = vmax.f32 %v540, %v571
      %575 = vrot.lane.b32.xlu0 %v504, 88
      %v576 = vpop.permute.xlu0 %575
      %577 = vrot.lane.b32.xlu0 %v505, 88
      %v578 = vpop.permute.xlu0 %577
      %579 = vrot.lane.b32.xlu0 %v506, 88
      %v580 = vpop.permute.xlu0 %579
      %vm581 = vcmp.lt.s32.totalorder %v199, 88
      %v582 = vsel %vm581, %v578, %v580
      %v583 = vsel %vm581, %v576, %v578
      %v584 = vsel %vm581, %v580, %v576
      %v585 = vadd.s32 %v199, 40
      %v586 = vadd.s32 %v200, 40
      %v587 = vadd.s32 %v201, 40
      %vm588 = vcmp.ge.s32.totalorder %v585, 0
      %vm589 = vcmp.ge.s32.totalorder %v586, 0
      %vm590 = vcmp.ge.s32.totalorder %v587, 0
      %vm591 = vcmp.lt.s32.totalorder %v585, 384
      %vm592 = vcmp.lt.s32.totalorder %v586, 384
      %vm593 = vcmp.lt.s32.totalorder %v587, 384
      %vm594 = vmand %vm588, %vm591
      %vm595 = vmand %vm589, %vm592
      %vm596 = vmand %vm590, %vm593
      %v597 = vsel %vm594, 1, 0
      %v598 = vsel %vm595, 1, 0
      %v599 = vsel %vm596, 1, 0
      %vm600 = vcmp.eq.s32.totalorder %v597, 1
      %vm601 = vcmp.eq.s32.totalorder %v598, 1
      %vm602 = vcmp.eq.s32.totalorder %v599, 1
      %v603 = vsel %vm600, %v583, -inf
      %v604 = vsel %vm601, %v582, -inf
      %v605 = vsel %vm602, %v584, -inf
      %v606 = vmax.f32 %v572, %v603
      %v607 = vmax.f32 %v573, %v604
      %v608 = vmax.f32 %v574, %v605
      %609 = vrot.lane.b32.xlu0 %v504, 40
      %v610 = vpop.permute.xlu0 %609
      %611 = vrot.lane.b32.xlu0 %v505, 40
      %v612 = vpop.permute.xlu0 %611
      %613 = vrot.lane.b32.xlu0 %v506, 40
      %v614 = vpop.permute.xlu0 %613
      %vm615 = vcmp.lt.s32.totalorder %v199, 40
      %v616 = vsel %vm615, %v612, %v614
      %v617 = vsel %vm615, %v610, %v612
      %v618 = vsel %vm615, %v614, %v610
      %v619 = vadd.s32 %v199, 4294967256
      %v620 = vadd.s32 %v200, 4294967256
      %v621 = vadd.s32 %v201, 4294967256
      %vm622 = vcmp.ge.s32.totalorder %v619, 0
      %vm623 = vcmp.ge.s32.totalorder %v620, 0
      %vm624 = vcmp.ge.s32.totalorder %v621, 0
      %vm625 = vcmp.lt.s32.totalorder %v619, 384
      %vm626 = vcmp.lt.s32.totalorder %v620, 384
      %vm627 = vcmp.lt.s32.totalorder %v621, 384
      %vm628 = vmand %vm622, %vm625
      %vm629 = vmand %vm623, %vm626
      %vm630 = vmand %vm624, %vm627
      %v631 = vsel %vm628, 1, 0
      %v632 = vsel %vm629, 1, 0
      %v633 = vsel %vm630, 1, 0
      %vm634 = vcmp.eq.s32.totalorder %v631, 1
      %vm635 = vcmp.eq.s32.totalorder %v632, 1
      %vm636 = vcmp.eq.s32.totalorder %v633, 1
      %v637 = vsel %vm634, %v618, -inf
      %v638 = vsel %vm635, %v617, -inf
      %v639 = vsel %vm636, %v616, -inf
      %v640 = vmax.f32 %v606, %v637
      %v641 = vmax.f32 %v607, %v638
      %v642 = vmax.f32 %v608, %v639
      %643 = vrot.lane.b32.xlu0 %v504, 68
      %v644 = vpop.permute.xlu0 %643
      %645 = vrot.lane.b32.xlu0 %v505, 68
      %v646 = vpop.permute.xlu0 %645
      %647 = vrot.lane.b32.xlu0 %v506, 68
      %v648 = vpop.permute.xlu0 %647
      %vm649 = vcmp.lt.s32.totalorder %v199, 68
      %v650 = vsel %vm649, %v646, %v648
      %v651 = vsel %vm649, %v644, %v646
      %v652 = vsel %vm649, %v648, %v644
      %v653 = vadd.s32 %v199, 60
      %v654 = vadd.s32 %v200, 60
      %v655 = vadd.s32 %v201, 60
      %vm656 = vcmp.ge.s32.totalorder %v653, 0
      %vm657 = vcmp.ge.s32.totalorder %v654, 0
      %vm658 = vcmp.ge.s32.totalorder %v655, 0
      %vm659 = vcmp.lt.s32.totalorder %v653, 384
      %vm660 = vcmp.lt.s32.totalorder %v654, 384
      %vm661 = vcmp.lt.s32.totalorder %v655, 384
      %vm662 = vmand %vm656, %vm659
      %vm663 = vmand %vm657, %vm660
      %vm664 = vmand %vm658, %vm661
      %v665 = vsel %vm662, 1, 0
      %v666 = vsel %vm663, 1, 0
      %v667 = vsel %vm664, 1, 0
      %vm668 = vcmp.eq.s32.totalorder %v665, 1
      %vm669 = vcmp.eq.s32.totalorder %v666, 1
      %vm670 = vcmp.eq.s32.totalorder %v667, 1
      %v671 = vsel %vm668, %v651, -inf
      %v672 = vsel %vm669, %v650, -inf
      %v673 = vsel %vm670, %v652, -inf
      %v674 = vmax.f32 %v640, %v671
      %v675 = vmax.f32 %v641, %v672
      %v676 = vmax.f32 %v642, %v673
      %677 = vrot.lane.b32.xlu0 %v504, 60
      %v678 = vpop.permute.xlu0 %677
      %679 = vrot.lane.b32.xlu0 %v505, 60
      %v680 = vpop.permute.xlu0 %679
      %681 = vrot.lane.b32.xlu0 %v506, 60
      %v682 = vpop.permute.xlu0 %681
      %vm683 = vcmp.lt.s32.totalorder %v199, 60
      %v684 = vsel %vm683, %v680, %v682
      %v685 = vsel %vm683, %v678, %v680
      %v686 = vsel %vm683, %v682, %v678
      %v687 = vadd.s32 %v199, 4294967236
      %v688 = vadd.s32 %v200, 4294967236
      %v689 = vadd.s32 %v201, 4294967236
      %vm690 = vcmp.ge.s32.totalorder %v687, 0
      %vm691 = vcmp.ge.s32.totalorder %v688, 0
      %vm692 = vcmp.ge.s32.totalorder %v689, 0
      %vm693 = vcmp.lt.s32.totalorder %v687, 384
      %vm694 = vcmp.lt.s32.totalorder %v688, 384
      %vm695 = vcmp.lt.s32.totalorder %v689, 384
      %vm696 = vmand %vm690, %vm693
      %vm697 = vmand %vm691, %vm694
      %vm698 = vmand %vm692, %vm695
      %v699 = vsel %vm696, 1, 0
      %v700 = vsel %vm697, 1, 0
      %v701 = vsel %vm698, 1, 0
      %vm702 = vcmp.eq.s32.totalorder %v699, 1
      %vm703 = vcmp.eq.s32.totalorder %v700, 1
      %vm704 = vcmp.eq.s32.totalorder %v701, 1
      %v705 = vsel %vm702, %v686, -inf
      %v706 = vsel %vm703, %v685, -inf
      %v707 = vsel %vm704, %v684, -inf
      %v708 = vmax.f32 %v674, %v705
      %v709 = vmax.f32 %v675, %v706
      %v710 = vmax.f32 %v676, %v707
      %711 = vrot.lane.b32.xlu0 %v504, 48
      %v712 = vpop.permute.xlu0 %711
      %713 = vrot.lane.b32.xlu0 %v505, 48
      %v714 = vpop.permute.xlu0 %713
      %715 = vrot.lane.b32.xlu0 %v506, 48
      %v716 = vpop.permute.xlu0 %715
      %vm717 = vcmp.lt.s32.totalorder %v199, 48
      %v718 = vsel %vm717, %v714, %v716
      %v719 = vsel %vm717, %v712, %v714
      %v720 = vsel %vm717, %v716, %v712
      %v721 = vadd.s32 %v199, 80
      %v722 = vadd.s32 %v200, 80
      %v723 = vadd.s32 %v201, 80
      %vm724 = vcmp.ge.s32.totalorder %v721, 0
      %vm725 = vcmp.ge.s32.totalorder %v722, 0
      %vm726 = vcmp.ge.s32.totalorder %v723, 0
      %vm727 = vcmp.lt.s32.totalorder %v721, 384
      %vm728 = vcmp.lt.s32.totalorder %v722, 384
      %vm729 = vcmp.lt.s32.totalorder %v723, 384
      %vm730 = vmand %vm724, %vm727
      %vm731 = vmand %vm725, %vm728
      %vm732 = vmand %vm726, %vm729
      %v733 = vsel %vm730, 1, 0
      %v734 = vsel %vm731, 1, 0
      %v735 = vsel %vm732, 1, 0
      %vm736 = vcmp.eq.s32.totalorder %v733, 1
      %vm737 = vcmp.eq.s32.totalorder %v734, 1
      %vm738 = vcmp.eq.s32.totalorder %v735, 1
      %v739 = vsel %vm736, %v719, -inf
      %v740 = vsel %vm737, %v718, -inf
      %v741 = vsel %vm738, %v720, -inf
      %v742 = vmax.f32 %v708, %v739
      %v743 = vmax.f32 %v709, %v740
      %v744 = vmax.f32 %v710, %v741
      %745 = vrot.lane.b32.xlu0 %v504, 80
      %v746 = vpop.permute.xlu0 %745
      %747 = vrot.lane.b32.xlu0 %v505, 80
      %v748 = vpop.permute.xlu0 %747
      %749 = vrot.lane.b32.xlu0 %v506, 80
      %v750 = vpop.permute.xlu0 %749
      %vm751 = vcmp.lt.s32.totalorder %v199, 80
      %v752 = vsel %vm751, %v748, %v750
      %v753 = vsel %vm751, %v746, %v748
      %v754 = vsel %vm751, %v750, %v746
      %v755 = vadd.s32 %v199, 4294967216
      %v756 = vadd.s32 %v200, 4294967216
      %v757 = vadd.s32 %v201, 4294967216
      %vm758 = vcmp.ge.s32.totalorder %v755, 0
      %vm759 = vcmp.ge.s32.totalorder %v756, 0
      %vm760 = vcmp.ge.s32.totalorder %v757, 0
      %vm761 = vcmp.lt.s32.totalorder %v755, 384
      %vm762 = vcmp.lt.s32.totalorder %v756, 384
      %vm763 = vcmp.lt.s32.totalorder %v757, 384
      %vm764 = vmand %vm758, %vm761
      %vm765 = vmand %vm759, %vm762
      %vm766 = vmand %vm760, %vm763
      %v767 = vsel %vm764, 1, 0
      %v768 = vsel %vm765, 1, 0
      %v769 = vsel %vm766, 1, 0
      %vm770 = vcmp.eq.s32.totalorder %v767, 1
      %vm771 = vcmp.eq.s32.totalorder %v768, 1
      %vm772 = vcmp.eq.s32.totalorder %v769, 1
      %v773 = vsel %vm770, %v754, -inf
      %v774 = vsel %vm771, %v753, -inf
      %v775 = vsel %vm772, %v752, -inf
      %v776 = vmax.f32 %v742, %v773
      %v777 = vmax.f32 %v743, %v774
      %v778 = vmax.f32 %v744, %v775
      %779 = vst [vmem:[%s197] sm:$0xff] %v776
      %780 = vst [vmem:[%s197 + $0x8] sm:$0xff] %v777
      %781 = vst [vmem:[%s197 + $0x10] sm:$0xff] %v778
      %p782 = scmp.lt.s32.totalorder %s15, 1
      %s783 = scalar_select %p782, %s15, 1
      %s784 = smul.addr %s783, 3
      %s785 = smul.addr %s784, 8
      %s786 = scalar_lea.vmem %s4, %s785
      // Predicated region
      $region37: #{cnn2d_block.3} parent=35 // pred_check
        %p787 = pneg %p122
      $region38: #{cnn2d_block.3} parent=35 // pred_check_branch
        %789 = sbr.rel (%p787) target = $region40
      $region39: #{cnn2d_block.3} parent=35 // pred_region
        _
      $region40: #{cnn2d_block.3} parent=35 // pred_fallthru
        _
    $region36: #{cnn2d_block.3} parent=5 // pred_fallthru
      _
    %p790 = scmp.le.s32.totalorder 2, %s10
    // Predicated region
    $region41: #{cnn2d_block.3} parent=5 // pred_check
      %p791 = pneg %p790
    $region42: #{cnn2d_block.3} parent=5 // pred_check_branch
      %793 = sbr.rel (%p791) target = $region44
    $region43: #{cnn2d_block.3} parent=5 // pred_region
      %s794 = ssub.s32 %s10, 2
      // Predicated region
      $region45: #{cnn2d_block.3} parent=43 // pred_check
        %p795 = pneg %p128
      $region46: #{cnn2d_block.3} parent=43 // pred_check_branch
        %797 = sbr.rel (%p795) target = $region48
      $region47: #{cnn2d_block.3} parent=43 // pred_region
        %p798 = scmp.lt.s32.totalorder %s16, 1
        %s799 = scalar_select %p798, %s16, 1
        %s800 = smul.addr %s799, 3
        %s801 = smul.addr %s800, 8
        %s802 = scalar_lea.vmem %s4, %s801
      $region48: #{cnn2d_block.3} parent=43 // pred_fallthru
        _
    $region44: #{cnn2d_block.3} parent=5 // pred_fallthru
      _
  $region6: #{cnn2d_block.3} parent=0 // loop_footer
    %s14 = sadd.s32 1, %s10
  $region7: #{cnn2d_block.3} parent=0 // loop_footer_branch
    %9 = sbr.rel target = $region3
  $region8: #{cnn2d_block.3} parent=0 // loop_exit
    _

</llo_original>
